<compile_context>
chip_gen: v7x
topology: tpu7x:2x2x1
jax: 0.10.0
libtpu: 0.0.40
codegen_flags: <defaults>
</compile_context>

<pallas_src>
import functools

import jax
import jax.numpy as jnp
import numpy as np
from jax import lax
from jax.experimental import pallas as pl
from jax.experimental.pallas import tpu as pltpu

# ----------------------------- model config --------------------------------
D_MODEL = 32
N_HEAD = 4
HEAD_DIM = D_MODEL // N_HEAD
MAX_LEN = 8            # the module requires seq == max_len for the rel-pos view
FF_DIM = 64
EPS = 1e-5
SEQ = MAX_LEN
BATCH = 2

# row layout inside the packed parameter tile (see prepare_params)
_ROW_BQKV, _ROW_B1, _ROW_B2, _ROW_G1, _ROW_BE1, _ROW_G2, _ROW_BE2 = range(7)
_REL_ROW0 = 8
_VEC_ROWS, _VEC_LANES = 16, 128


def _layer_norm(x, gamma, beta, eps):
    mean = jnp.mean(x, axis=-1, keepdims=True)
    var = jnp.mean(jnp.square(x - mean), axis=-1, keepdims=True)
    return (x - mean) * lax.rsqrt(var + eps) * gamma + beta


# ------------------------------- kernel ------------------------------------
def rpe_sa_kernel(x_ref, w_in_ref, w2_ref, vec_ref, o_ref, *, b_blk):
    x = x_ref[...]                                    # (b_blk*SEQ, D) batch-major rows

    g1 = vec_ref[_ROW_G1:_ROW_G1 + 1, :D_MODEL]
    be1 = vec_ref[_ROW_BE1:_ROW_BE1 + 1, :D_MODEL]
    g2 = vec_ref[_ROW_G2:_ROW_G2 + 1, :D_MODEL]
    be2 = vec_ref[_ROW_BE2:_ROW_BE2 + 1, :D_MODEL]

    # ---- sublayer 1: x + attention(norm1(x)) ----
    xn = _layer_norm(x, g1, be1, EPS)
    # fused QKV projection: one (rows,32)x(32,96) MXU push
    qkv = jnp.dot(xn, w_in_ref[:, :3 * D_MODEL],
                  preferred_element_type=jnp.float32)
    qkv = qkv + vec_ref[_ROW_BQKV:_ROW_BQKV + 1, :3 * D_MODEL]        # (rows, 96)

    head_outs = []
    for h in range(N_HEAD):                           # static 4-iteration loop
        q_sl = slice(h * HEAD_DIM, (h + 1) * HEAD_DIM)
        k_sl = slice(D_MODEL + h * HEAD_DIM, D_MODEL + (h + 1) * HEAD_DIM)
        v_sl = slice(2 * D_MODEL + h * HEAD_DIM, 2 * D_MODEL + (h + 1) * HEAD_DIM)
        # tile-aligned reshapes (rows split at the SEQ=8 sublane boundary)
        q = qkv[:, q_sl].reshape(b_blk, SEQ, HEAD_DIM)
        k = qkv[:, k_sl].reshape(b_blk, SEQ, HEAD_DIM)
        v = qkv[:, v_sl].reshape(b_blk, SEQ, HEAD_DIM)
        rel_h = vec_ref[_REL_ROW0:_REL_ROW0 + SEQ, h * SEQ:(h + 1) * SEQ]  # (S,S)
        # NOTE: the reference module does NOT scale by 1/sqrt(head_dim).
        s = jnp.einsum("bqd,bkd->bqk", q, k,
                       preferred_element_type=jnp.float32)            # (b_blk,S,S)
        s = s + rel_h[None, :, :]                                      # rel-pos bias
        s = s - jnp.max(s, axis=-1, keepdims=True)
        p = jnp.exp(s)
        p = p * pl.reciprocal(jnp.sum(p, axis=-1, keepdims=True), approx=False)
        o = jnp.einsum("bqk,bkd->bqd", p, v,
                       preferred_element_type=jnp.float32)             # (b_blk,S,hd)
        head_outs.append(o.reshape(b_blk * SEQ, HEAD_DIM))
    attn = jnp.concatenate(head_outs, axis=-1)        # (rows, D) -- stays in vregs
    x1 = x + attn                                     # dropout1: identity (eval)

    # ---- sublayer 2: x1 + ff(norm2(x1)) ----
    xn2 = _layer_norm(x1, g2, be2, EPS)
    h1 = jnp.dot(xn2, w_in_ref[:, 3 * D_MODEL:3 * D_MODEL + FF_DIM],
                 preferred_element_type=jnp.float32)
    h1 = jnp.maximum(h1 + vec_ref[_ROW_B1:_ROW_B1 + 1, :FF_DIM], 0.0)  # ReLU; dropout: id
    ff = jnp.dot(h1, w2_ref[...], preferred_element_type=jnp.float32)
    ff = ff + vec_ref[_ROW_B2:_ROW_B2 + 1, :D_MODEL]
    o_ref[...] = (x1 + ff).astype(o_ref.dtype)        # dropout2: identity (eval)


# ----------------------- one-time parameter packing --------------------------
def prepare_params(params):
    """Loop-invariant weight prep, hoisted out of the per-call forward path."""
    # fused [Wq^T | Wk^T | Wv^T | W1^T]  -> one (32,160) input
    w_in = jnp.concatenate(
        [params["wq"].T, params["wk"].T, params["wv"].T, params["w1"].T],
        axis=1).astype(jnp.float32)                                   # (32, 160)
    w2_t = params["w2"].T.astype(jnp.float32)                         # (64, 32)

    # all biases / LayerNorm params / rel-pos bias packed into ONE (16,128) tile
    vecs = jnp.zeros((_VEC_ROWS, _VEC_LANES), jnp.float32)
    vecs = vecs.at[_ROW_BQKV, :3 * D_MODEL].set(
        jnp.concatenate([params["bq"], params["bk"], params["bv"]]))
    vecs = vecs.at[_ROW_B1, :FF_DIM].set(params["b1"])
    vecs = vecs.at[_ROW_B2, :D_MODEL].set(params["b2"])
    vecs = vecs.at[_ROW_G1, :D_MODEL].set(params["g1"])
    vecs = vecs.at[_ROW_BE1, :D_MODEL].set(params["be1"])
    vecs = vecs.at[_ROW_G2, :D_MODEL].set(params["g2"])
    vecs = vecs.at[_ROW_BE2, :D_MODEL].set(params["be2"])
    # relative positional encoding: rel_lane[i, h*SEQ + j] = table[max_len-1-i+j, h]
    rel_index = (MAX_LEN - 1) - jnp.arange(SEQ)[:, None] + jnp.arange(SEQ)[None, :]
    rel = params["rel_table"][rel_index]                              # (S, S, H)
    rel_lane = jnp.transpose(rel, (0, 2, 1)).reshape(SEQ, N_HEAD * SEQ)
    vecs = vecs.at[_REL_ROW0:_REL_ROW0 + SEQ, :N_HEAD * SEQ].set(rel_lane)
    return {"w_in": w_in, "w2_t": w2_t, "vecs": vecs.astype(jnp.float32)}


# ------------------------------- wrapper ------------------------------------
@jax.jit
def rpe_self_attention(x_sbd, prepared):
    """x_sbd: (seq, batch, d_model) float32. Returns same shape."""
    seq, batch, d_model = x_sbd.shape
    assert seq == MAX_LEN and d_model == D_MODEL

    rows = batch * seq
    # Single grid step at small sizes (per-step overhead dominates); only shard
    # the batch across 2 "parallel" steps (v7x dual-TC) for much larger batches.
    n_steps = 2 if (batch % 2 == 0 and rows >= 1024) else 1
    b_blk = batch // n_steps
    blk_rows = b_blk * seq

    # Batch-major row slab: a tiny copy fused under this jit.  Kept here so every
    # in-kernel reshape is tile-aligned (cheaper/safer than in-kernel sublane
    # interleaving of the native seq-major layout).
    x2 = jnp.transpose(x_sbd, (1, 0, 2)).reshape(rows, d_model)

    out = pl.pallas_call(
        functools.partial(rpe_sa_kernel, b_blk=b_blk),
        out_shape=jax.ShapeDtypeStruct((rows, d_model), jnp.float32),
        grid=(n_steps,),
        in_specs=[
            pl.BlockSpec((blk_rows, d_model), lambda i: (i, 0)),               # x slab
            pl.BlockSpec((D_MODEL, 3 * D_MODEL + FF_DIM), lambda i: (0, 0)),   # [Wqkv^T|W1^T]
            pl.BlockSpec((FF_DIM, D_MODEL), lambda i: (0, 0)),                 # W2^T
            pl.BlockSpec((_VEC_ROWS, _VEC_LANES), lambda i: (0, 0)),           # packed params
        ],
        out_specs=pl.BlockSpec((blk_rows, d_model), lambda i: (i, 0)),
        compiler_params=pltpu.CompilerParams(dimension_semantics=("parallel",)),
    )(x2, prepared["w_in"], prepared["w2_t"], prepared["vecs"])

    return jnp.transpose(out.reshape(batch, seq, d_model), (1, 0, 2))  # (seq, batch, d)


# -------------------------- pure-JAX reference ------------------------------
def reference(x, p):
    """Torch-faithful forward in plain JAX. x: (seq, batch, d_model)."""
    seq, batch, d_model = x.shape

    def ln(y, g, b):
        m = jnp.mean(y, axis=-1, keepdims=True)
        v = jnp.mean(jnp.square(y - m), axis=-1, keepdims=True)
        return (y - m) / jnp.sqrt(v + EPS) * g + b

    # attention sublayer
    xn = ln(x, p["g1"], p["be1"])
    q = (xn @ p["wq"].T + p["bq"]).reshape(seq, batch * N_HEAD, HEAD_DIM)
    k = (xn @ p["wk"].T + p["bk"]).reshape(seq, batch * N_HEAD, HEAD_DIM)
    v = (xn @ p["wv"].T + p["bv"]).reshape(seq, batch * N_HEAD, HEAD_DIM)
    weight = jnp.einsum("ijk,ljk->jil", q, k).reshape(batch, N_HEAD, seq, seq)
    rel_index = (MAX_LEN - 1) - jnp.arange(seq)[:, None] + jnp.arange(seq)[None, :]
    rel = jnp.transpose(p["rel_table"][rel_index], (2, 0, 1))     # (n_head, seq, seq)
    weight = jax.nn.softmax(weight + rel[None], axis=-1).reshape(-1, seq, seq)
    attn = jnp.einsum("ijk,kil->jil", weight, v).reshape(seq, batch, d_model)
    x1 = x + attn

    # feed-forward sublayer
    xn2 = ln(x1, p["g2"], p["be2"])
    ff = jnp.maximum(xn2 @ p["w1"].T + p["b1"], 0.0) @ p["w2"].T + p["b2"]
    return x1 + ff


# --------------------------------- main --------------------------------------
if __name__ == "__main__":
    key = jax.random.PRNGKey(0)
    keys = jax.random.split(key, 16)

    def rnd(k, shape, scale=0.1):
        return (scale * jax.random.normal(k, shape)).astype(jnp.float32)

    params = {
        "wq": rnd(keys[0], (D_MODEL, D_MODEL)), "bq": rnd(keys[1], (D_MODEL,)),
        "wk": rnd(keys[2], (D_MODEL, D_MODEL)), "bk": rnd(keys[3], (D_MODEL,)),
        "wv": rnd(keys[4], (D_MODEL, D_MODEL)), "bv": rnd(keys[5], (D_MODEL,)),
        "w1": rnd(keys[6], (FF_DIM, D_MODEL)),  "b1": rnd(keys[7], (FF_DIM,)),
        "w2": rnd(keys[8], (D_MODEL, FF_DIM)),  "b2": rnd(keys[9], (D_MODEL,)),
        "g1": jnp.ones((D_MODEL,), jnp.float32), "be1": jnp.zeros((D_MODEL,), jnp.float32),
        "g2": jnp.ones((D_MODEL,), jnp.float32), "be2": jnp.zeros((D_MODEL,), jnp.float32),
        # nn.Parameter is zero-initialized in the module; use a deterministic
        # non-zero init so the relative-position path is actually exercised.
        "rel_table": rnd(keys[10], (2 * MAX_LEN - 1, N_HEAD)),
    }

    x = jax.random.normal(keys[11], (SEQ, BATCH, D_MODEL), dtype=jnp.float32)

    prepared = prepare_params(params)        # hoisted: once per parameter set
    out = jax.block_until_ready(rpe_self_attention(x, prepared))
    ref = jax.block_until_ready(reference(x, params))

    assert out.shape == (SEQ, BATCH, D_MODEL)
    np.testing.assert_allclose(np.asarray(out), np.asarray(ref), atol=1e-4, rtol=1e-4)
    print("KERNEL_OK")
</pallas_src>

<mosaic_0001>
module attributes {stable_mosaic.version = 11 : i64} {
  func.func @rpe_sa_kernel(%arg0: i32, %arg1: memref<16x32xf32, #tpu.memory_space<vmem>>, %arg2: memref<32x160xf32, #tpu.memory_space<vmem>>, %arg3: memref<64x32xf32, #tpu.memory_space<vmem>>, %arg4: memref<16x128xf32, #tpu.memory_space<vmem>>, %arg5: memref<16x32xf32, #tpu.memory_space<vmem>>) attributes {dimension_semantics = [#tpu.dimension_semantics<parallel>], iteration_bounds = array<i64: 1>, scalar_prefetch = 0 : i64, scratch_operands = 0 : i64, tpu.core_type = #tpu.core_type<tc>, window_params = [{transform_indices = @transform_0, window_bounds = array<i64: 16, 32>}, {pipeline_mode = #tpu.pipeline_mode<synchronous>, transform_indices = @transform_1, window_bounds = array<i64: 32, 160>}, {pipeline_mode = #tpu.pipeline_mode<synchronous>, transform_indices = @transform_2, window_bounds = array<i64: 64, 32>}, {pipeline_mode = #tpu.pipeline_mode<synchronous>, transform_indices = @transform_3, window_bounds = array<i64: 16, 128>}, {transform_indices = @transform_4, window_bounds = array<i64: 16, 32>}]} {
    %c0 = arith.constant 0 : index
    %c0_0 = arith.constant 0 : index
    %0 = vector.load %arg1[%c0, %c0_0] : memref<16x32xf32, #tpu.memory_space<vmem>>, vector<16x32xf32>
    %c3 = arith.constant 3 : index
    %c0_1 = arith.constant 0 : index
    %1 = vector.load %arg4[%c3, %c0_1] : memref<16x128xf32, #tpu.memory_space<vmem>>, vector<1x32xf32>
    %c4 = arith.constant 4 : index
    %c0_2 = arith.constant 0 : index
    %2 = vector.load %arg4[%c4, %c0_2] : memref<16x128xf32, #tpu.memory_space<vmem>>, vector<1x32xf32>
    %c5 = arith.constant 5 : index
    %c0_3 = arith.constant 0 : index
    %3 = vector.load %arg4[%c5, %c0_3] : memref<16x128xf32, #tpu.memory_space<vmem>>, vector<1x32xf32>
    %c6 = arith.constant 6 : index
    %c0_4 = arith.constant 0 : index
    %4 = vector.load %arg4[%c6, %c0_4] : memref<16x128xf32, #tpu.memory_space<vmem>>, vector<1x32xf32>
    %cst = arith.constant dense<0.000000e+00> : vector<16xf32>
    %5 = vector.multi_reduction <add>, %0, %cst [1] : vector<16x32xf32> to vector<16xf32>
    %6 = vector.shape_cast %5 : vector<16xf32> to vector<16x1xf32>
    %cst_5 = arith.constant 3.200000e+01 : f32
    %7 = vector.broadcast %cst_5 : f32 to vector<16x1xf32>
    %8 = arith.divf %6, %7 : vector<16x1xf32>
    %9 = vector.broadcast %8 : vector<16x1xf32> to vector<16x32xf32>
    %10 = arith.subf %0, %9 : vector<16x32xf32>
    %11 = arith.mulf %10, %10 : vector<16x32xf32>
    %cst_6 = arith.constant dense<0.000000e+00> : vector<16xf32>
    %12 = vector.multi_reduction <add>, %11, %cst_6 [1] : vector<16x32xf32> to vector<16xf32>
    %13 = vector.shape_cast %12 : vector<16xf32> to vector<16x1xf32>
    %cst_7 = arith.constant 3.200000e+01 : f32
    %14 = vector.broadcast %cst_7 : f32 to vector<16x1xf32>
    %15 = arith.divf %13, %14 : vector<16x1xf32>
    %16 = vector.broadcast %8 : vector<16x1xf32> to vector<16x32xf32>
    %17 = arith.subf %0, %16 : vector<16x32xf32>
    %cst_8 = arith.constant 9.99999974E-6 : f32
    %18 = vector.broadcast %cst_8 : f32 to vector<16x1xf32>
    %19 = arith.addf %15, %18 : vector<16x1xf32>
    %20 = math.rsqrt %19 : vector<16x1xf32>
    %21 = vector.broadcast %20 : vector<16x1xf32> to vector<16x32xf32>
    %22 = arith.mulf %17, %21 : vector<16x32xf32>
    %23 = vector.broadcast %1 : vector<1x32xf32> to vector<16x32xf32>
    %24 = arith.mulf %22, %23 : vector<16x32xf32>
    %25 = vector.broadcast %2 : vector<1x32xf32> to vector<16x32xf32>
    %26 = arith.addf %24, %25 : vector<16x32xf32>
    %c0_9 = arith.constant 0 : index
    %c0_10 = arith.constant 0 : index
    %27 = vector.load %arg2[%c0_9, %c0_10] : memref<32x160xf32, #tpu.memory_space<vmem>>, vector<32x96xf32>
    %cst_11 = arith.constant dense<0.000000e+00> : vector<16x96xf32>
    %28 = tpu.matmul %26, %27, %cst_11 {dimension_numbers = #tpu.dot_dimension_numbers<[1], [0], [0], [1], [0, 0, 1, 1], [], []>} : vector<16x32xf32>, vector<32x96xf32>, vector<16x96xf32> -> vector<16x96xf32>
    %c0_12 = arith.constant 0 : index
    %c0_13 = arith.constant 0 : index
    %29 = vector.load %arg4[%c0_12, %c0_13] : memref<16x128xf32, #tpu.memory_space<vmem>>, vector<1x96xf32>
    %30 = vector.broadcast %29 : vector<1x96xf32> to vector<16x96xf32>
    %31 = arith.addf %28, %30 : vector<16x96xf32>
    %32 = vector.extract_strided_slice %31 {offsets = [0, 0], sizes = [16, 8], strides = [1, 1]} : vector<16x96xf32> to vector<16x8xf32>
    %33 = vector.shape_cast %32 : vector<16x8xf32> to vector<2x8x8xf32>
    %34 = vector.extract_strided_slice %31 {offsets = [0, 32], sizes = [16, 8], strides = [1, 1]} : vector<16x96xf32> to vector<16x8xf32>
    %35 = vector.shape_cast %34 : vector<16x8xf32> to vector<2x8x8xf32>
    %36 = vector.extract_strided_slice %31 {offsets = [0, 64], sizes = [16, 8], strides = [1, 1]} : vector<16x96xf32> to vector<16x8xf32>
    %37 = vector.shape_cast %36 : vector<16x8xf32> to vector<2x8x8xf32>
    %c8 = arith.constant 8 : index
    %c0_14 = arith.constant 0 : index
    %38 = vector.load %arg4[%c8, %c0_14] : memref<16x128xf32, #tpu.memory_space<vmem>>, vector<8x8xf32>
    "tpu.trace_start"() <{level = 10 : i32, message = "bqd,bkd->bqk"}> : () -> ()
    %cst_15 = arith.constant dense<0.000000e+00> : vector<2x8x8xf32>
    %39 = tpu.matmul %33, %35, %cst_15 {dimension_numbers = #tpu.dot_dimension_numbers<[2], [2], [1], [1], [0, 0, 0, 1, 1, 1], [0], [0]>} : vector<2x8x8xf32>, vector<2x8x8xf32>, vector<2x8x8xf32> -> vector<2x8x8xf32>
    "tpu.trace_stop"() : () -> ()
    %40 = vector.shape_cast %38 : vector<8x8xf32> to vector<1x8x8xf32>
    %41 = vector.broadcast %40 : vector<1x8x8xf32> to vector<2x8x8xf32>
    %42 = arith.addf %39, %41 : vector<2x8x8xf32>
    %cst_16 = arith.constant dense<0xFF800000> : vector<2x8xf32>
    %43 = vector.multi_reduction <maximumf>, %42, %cst_16 [2] : vector<2x8x8xf32> to vector<2x8xf32>
    %44 = vector.shape_cast %43 : vector<2x8xf32> to vector<2x8x1xf32>
    %45 = vector.broadcast %44 : vector<2x8x1xf32> to vector<2x8x8xf32>
    %46 = arith.subf %42, %45 : vector<2x8x8xf32>
    %47 = math.exp %46 : vector<2x8x8xf32>
    %cst_17 = arith.constant dense<0.000000e+00> : vector<2x8xf32>
    %48 = vector.multi_reduction <add>, %47, %cst_17 [2] : vector<2x8x8xf32> to vector<2x8xf32>
    %49 = vector.shape_cast %48 : vector<2x8xf32> to vector<2x8x1xf32>
    %50 = tpu.reciprocal %49 : vector<2x8x1xf32> -> vector<2x8x1xf32>
    %51 = vector.broadcast %50 : vector<2x8x1xf32> to vector<2x8x8xf32>
    %52 = arith.mulf %47, %51 : vector<2x8x8xf32>
    "tpu.trace_start"() <{level = 10 : i32, message = "bqk,bkd->bqd"}> : () -> ()
    %cst_18 = arith.constant dense<0.000000e+00> : vector<2x8x8xf32>
    %53 = tpu.matmul %52, %37, %cst_18 {dimension_numbers = #tpu.dot_dimension_numbers<[2], [1], [1], [2], [0, 0, 0, 1, 1, 2], [0], [0]>} : vector<2x8x8xf32>, vector<2x8x8xf32>, vector<2x8x8xf32> -> vector<2x8x8xf32>
    "tpu.trace_stop"() : () -> ()
    %54 = vector.shape_cast %53 : vector<2x8x8xf32> to vector<16x8xf32>
    %55 = vector.extract_strided_slice %31 {offsets = [0, 8], sizes = [16, 8], strides = [1, 1]} : vector<16x96xf32> to vector<16x8xf32>
    %56 = vector.shape_cast %55 : vector<16x8xf32> to vector<2x8x8xf32>
    %57 = vector.extract_strided_slice %31 {offsets = [0, 40], sizes = [16, 8], strides = [1, 1]} : vector<16x96xf32> to vector<16x8xf32>
    %58 = vector.shape_cast %57 : vector<16x8xf32> to vector<2x8x8xf32>
    %59 = vector.extract_strided_slice %31 {offsets = [0, 72], sizes = [16, 8], strides = [1, 1]} : vector<16x96xf32> to vector<16x8xf32>
    %60 = vector.shape_cast %59 : vector<16x8xf32> to vector<2x8x8xf32>
    %c8_19 = arith.constant 8 : index
    %c8_20 = arith.constant 8 : index
    %61 = vector.load %arg4[%c8_19, %c8_20] : memref<16x128xf32, #tpu.memory_space<vmem>>, vector<8x8xf32>
    "tpu.trace_start"() <{level = 10 : i32, message = "bqd,bkd->bqk"}> : () -> ()
    %cst_21 = arith.constant dense<0.000000e+00> : vector<2x8x8xf32>
    %62 = tpu.matmul %56, %58, %cst_21 {dimension_numbers = #tpu.dot_dimension_numbers<[2], [2], [1], [1], [0, 0, 0, 1, 1, 1], [0], [0]>} : vector<2x8x8xf32>, vector<2x8x8xf32>, vector<2x8x8xf32> -> vector<2x8x8xf32>
    "tpu.trace_stop"() : () -> ()
    %63 = vector.shape_cast %61 : vector<8x8xf32> to vector<1x8x8xf32>
    %64 = vector.broadcast %63 : vector<1x8x8xf32> to vector<2x8x8xf32>
    %65 = arith.addf %62, %64 : vector<2x8x8xf32>
    %cst_22 = arith.constant dense<0xFF800000> : vector<2x8xf32>
    %66 = vector.multi_reduction <maximumf>, %65, %cst_22 [2] : vector<2x8x8xf32> to vector<2x8xf32>
    %67 = vector.shape_cast %66 : vector<2x8xf32> to vector<2x8x1xf32>
    %68 = vector.broadcast %67 : vector<2x8x1xf32> to vector<2x8x8xf32>
    %69 = arith.subf %65, %68 : vector<2x8x8xf32>
    %70 = math.exp %69 : vector<2x8x8xf32>
    %cst_23 = arith.constant dense<0.000000e+00> : vector<2x8xf32>
    %71 = vector.multi_reduction <add>, %70, %cst_23 [2] : vector<2x8x8xf32> to vector<2x8xf32>
    %72 = vector.shape_cast %71 : vector<2x8xf32> to vector<2x8x1xf32>
    %73 = tpu.reciprocal %72 : vector<2x8x1xf32> -> vector<2x8x1xf32>
    %74 = vector.broadcast %73 : vector<2x8x1xf32> to vector<2x8x8xf32>
    %75 = arith.mulf %70, %74 : vector<2x8x8xf32>
    "tpu.trace_start"() <{level = 10 : i32, message = "bqk,bkd->bqd"}> : () -> ()
    %cst_24 = arith.constant dense<0.000000e+00> : vector<2x8x8xf32>
    %76 = tpu.matmul %75, %60, %cst_24 {dimension_numbers = #tpu.dot_dimension_numbers<[2], [1], [1], [2], [0, 0, 0, 1, 1, 2], [0], [0]>} : vector<2x8x8xf32>, vector<2x8x8xf32>, vector<2x8x8xf32> -> vector<2x8x8xf32>
    "tpu.trace_stop"() : () -> ()
    %77 = vector.shape_cast %76 : vector<2x8x8xf32> to vector<16x8xf32>
    %78 = vector.extract_strided_slice %31 {offsets = [0, 16], sizes = [16, 8], strides = [1, 1]} : vector<16x96xf32> to vector<16x8xf32>
    %79 = vector.shape_cast %78 : vector<16x8xf32> to vector<2x8x8xf32>
    %80 = vector.extract_strided_slice %31 {offsets = [0, 48], sizes = [16, 8], strides = [1, 1]} : vector<16x96xf32> to vector<16x8xf32>
    %81 = vector.shape_cast %80 : vector<16x8xf32> to vector<2x8x8xf32>
    %82 = vector.extract_strided_slice %31 {offsets = [0, 80], sizes = [16, 8], strides = [1, 1]} : vector<16x96xf32> to vector<16x8xf32>
    %83 = vector.shape_cast %82 : vector<16x8xf32> to vector<2x8x8xf32>
    %c8_25 = arith.constant 8 : index
    %c16 = arith.constant 16 : index
    %84 = vector.load %arg4[%c8_25, %c16] : memref<16x128xf32, #tpu.memory_space<vmem>>, vector<8x8xf32>
    "tpu.trace_start"() <{level = 10 : i32, message = "bqd,bkd->bqk"}> : () -> ()
    %cst_26 = arith.constant dense<0.000000e+00> : vector<2x8x8xf32>
    %85 = tpu.matmul %79, %81, %cst_26 {dimension_numbers = #tpu.dot_dimension_numbers<[2], [2], [1], [1], [0, 0, 0, 1, 1, 1], [0], [0]>} : vector<2x8x8xf32>, vector<2x8x8xf32>, vector<2x8x8xf32> -> vector<2x8x8xf32>
    "tpu.trace_stop"() : () -> ()
    %86 = vector.shape_cast %84 : vector<8x8xf32> to vector<1x8x8xf32>
    %87 = vector.broadcast %86 : vector<1x8x8xf32> to vector<2x8x8xf32>
    %88 = arith.addf %85, %87 : vector<2x8x8xf32>
    %cst_27 = arith.constant dense<0xFF800000> : vector<2x8xf32>
    %89 = vector.multi_reduction <maximumf>, %88, %cst_27 [2] : vector<2x8x8xf32> to vector<2x8xf32>
    %90 = vector.shape_cast %89 : vector<2x8xf32> to vector<2x8x1xf32>
    %91 = vector.broadcast %90 : vector<2x8x1xf32> to vector<2x8x8xf32>
    %92 = arith.subf %88, %91 : vector<2x8x8xf32>
    %93 = math.exp %92 : vector<2x8x8xf32>
    %cst_28 = arith.constant dense<0.000000e+00> : vector<2x8xf32>
    %94 = vector.multi_reduction <add>, %93, %cst_28 [2] : vector<2x8x8xf32> to vector<2x8xf32>
    %95 = vector.shape_cast %94 : vector<2x8xf32> to vector<2x8x1xf32>
    %96 = tpu.reciprocal %95 : vector<2x8x1xf32> -> vector<2x8x1xf32>
    %97 = vector.broadcast %96 : vector<2x8x1xf32> to vector<2x8x8xf32>
    %98 = arith.mulf %93, %97 : vector<2x8x8xf32>
    "tpu.trace_start"() <{level = 10 : i32, message = "bqk,bkd->bqd"}> : () -> ()
    %cst_29 = arith.constant dense<0.000000e+00> : vector<2x8x8xf32>
    %99 = tpu.matmul %98, %83, %cst_29 {dimension_numbers = #tpu.dot_dimension_numbers<[2], [1], [1], [2], [0, 0, 0, 1, 1, 2], [0], [0]>} : vector<2x8x8xf32>, vector<2x8x8xf32>, vector<2x8x8xf32> -> vector<2x8x8xf32>
    "tpu.trace_stop"() : () -> ()
    %100 = vector.shape_cast %99 : vector<2x8x8xf32> to vector<16x8xf32>
    %101 = vector.extract_strided_slice %31 {offsets = [0, 24], sizes = [16, 8], strides = [1, 1]} : vector<16x96xf32> to vector<16x8xf32>
    %102 = vector.shape_cast %101 : vector<16x8xf32> to vector<2x8x8xf32>
    %103 = vector.extract_strided_slice %31 {offsets = [0, 56], sizes = [16, 8], strides = [1, 1]} : vector<16x96xf32> to vector<16x8xf32>
    %104 = vector.shape_cast %103 : vector<16x8xf32> to vector<2x8x8xf32>
    %105 = vector.extract_strided_slice %31 {offsets = [0, 88], sizes = [16, 8], strides = [1, 1]} : vector<16x96xf32> to vector<16x8xf32>
    %106 = vector.shape_cast %105 : vector<16x8xf32> to vector<2x8x8xf32>
    %c8_30 = arith.constant 8 : index
    %c24 = arith.constant 24 : index
    %107 = vector.load %arg4[%c8_30, %c24] : memref<16x128xf32, #tpu.memory_space<vmem>>, vector<8x8xf32>
    "tpu.trace_start"() <{level = 10 : i32, message = "bqd,bkd->bqk"}> : () -> ()
    %cst_31 = arith.constant dense<0.000000e+00> : vector<2x8x8xf32>
    %108 = tpu.matmul %102, %104, %cst_31 {dimension_numbers = #tpu.dot_dimension_numbers<[2], [2], [1], [1], [0, 0, 0, 1, 1, 1], [0], [0]>} : vector<2x8x8xf32>, vector<2x8x8xf32>, vector<2x8x8xf32> -> vector<2x8x8xf32>
    "tpu.trace_stop"() : () -> ()
    %109 = vector.shape_cast %107 : vector<8x8xf32> to vector<1x8x8xf32>
    %110 = vector.broadcast %109 : vector<1x8x8xf32> to vector<2x8x8xf32>
    %111 = arith.addf %108, %110 : vector<2x8x8xf32>
    %cst_32 = arith.constant dense<0xFF800000> : vector<2x8xf32>
    %112 = vector.multi_reduction <maximumf>, %111, %cst_32 [2] : vector<2x8x8xf32> to vector<2x8xf32>
    %113 = vector.shape_cast %112 : vector<2x8xf32> to vector<2x8x1xf32>
    %114 = vector.broadcast %113 : vector<2x8x1xf32> to vector<2x8x8xf32>
    %115 = arith.subf %111, %114 : vector<2x8x8xf32>
    %116 = math.exp %115 : vector<2x8x8xf32>
    %cst_33 = arith.constant dense<0.000000e+00> : vector<2x8xf32>
    %117 = vector.multi_reduction <add>, %116, %cst_33 [2] : vector<2x8x8xf32> to vector<2x8xf32>
    %118 = vector.shape_cast %117 : vector<2x8xf32> to vector<2x8x1xf32>
    %119 = tpu.reciprocal %118 : vector<2x8x1xf32> -> vector<2x8x1xf32>
    %120 = vector.broadcast %119 : vector<2x8x1xf32> to vector<2x8x8xf32>
    %121 = arith.mulf %116, %120 : vector<2x8x8xf32>
    "tpu.trace_start"() <{level = 10 : i32, message = "bqk,bkd->bqd"}> : () -> ()
    %cst_34 = arith.constant dense<0.000000e+00> : vector<2x8x8xf32>
    %122 = tpu.matmul %121, %106, %cst_34 {dimension_numbers = #tpu.dot_dimension_numbers<[2], [1], [1], [2], [0, 0, 0, 1, 1, 2], [0], [0]>} : vector<2x8x8xf32>, vector<2x8x8xf32>, vector<2x8x8xf32> -> vector<2x8x8xf32>
    "tpu.trace_stop"() : () -> ()
    %123 = vector.shape_cast %122 : vector<2x8x8xf32> to vector<16x8xf32>
    %124 = tpu.concatenate %54, %77, %100, %123 in 1 : vector<16x8xf32>, vector<16x8xf32>, vector<16x8xf32>, vector<16x8xf32> -> vector<16x32xf32>
    %125 = arith.addf %0, %124 : vector<16x32xf32>
    %cst_35 = arith.constant dense<0.000000e+00> : vector<16xf32>
    %126 = vector.multi_reduction <add>, %125, %cst_35 [1] : vector<16x32xf32> to vector<16xf32>
    %127 = vector.shape_cast %126 : vector<16xf32> to vector<16x1xf32>
    %cst_36 = arith.constant 3.200000e+01 : f32
    %128 = vector.broadcast %cst_36 : f32 to vector<16x1xf32>
    %129 = arith.divf %127, %128 : vector<16x1xf32>
    %130 = vector.broadcast %129 : vector<16x1xf32> to vector<16x32xf32>
    %131 = arith.subf %125, %130 : vector<16x32xf32>
    %132 = arith.mulf %131, %131 : vector<16x32xf32>
    %cst_37 = arith.constant dense<0.000000e+00> : vector<16xf32>
    %133 = vector.multi_reduction <add>, %132, %cst_37 [1] : vector<16x32xf32> to vector<16xf32>
    %134 = vector.shape_cast %133 : vector<16xf32> to vector<16x1xf32>
    %cst_38 = arith.constant 3.200000e+01 : f32
    %135 = vector.broadcast %cst_38 : f32 to vector<16x1xf32>
    %136 = arith.divf %134, %135 : vector<16x1xf32>
    %137 = vector.broadcast %129 : vector<16x1xf32> to vector<16x32xf32>
    %138 = arith.subf %125, %137 : vector<16x32xf32>
    %cst_39 = arith.constant 9.99999974E-6 : f32
    %139 = vector.broadcast %cst_39 : f32 to vector<16x1xf32>
    %140 = arith.addf %136, %139 : vector<16x1xf32>
    %141 = math.rsqrt %140 : vector<16x1xf32>
    %142 = vector.broadcast %141 : vector<16x1xf32> to vector<16x32xf32>
    %143 = arith.mulf %138, %142 : vector<16x32xf32>
    %144 = vector.broadcast %3 : vector<1x32xf32> to vector<16x32xf32>
    %145 = arith.mulf %143, %144 : vector<16x32xf32>
    %146 = vector.broadcast %4 : vector<1x32xf32> to vector<16x32xf32>
    %147 = arith.addf %145, %146 : vector<16x32xf32>
    %c0_40 = arith.constant 0 : index
    %c96 = arith.constant 96 : index
    %148 = vector.load %arg2[%c0_40, %c96] : memref<32x160xf32, #tpu.memory_space<vmem>>, vector<32x64xf32>
    %cst_41 = arith.constant dense<0.000000e+00> : vector<16x64xf32>
    %149 = tpu.matmul %147, %148, %cst_41 {dimension_numbers = #tpu.dot_dimension_numbers<[1], [0], [0], [1], [0, 0, 1, 1], [], []>} : vector<16x32xf32>, vector<32x64xf32>, vector<16x64xf32> -> vector<16x64xf32>
    %c1 = arith.constant 1 : index
    %c0_42 = arith.constant 0 : index
    %150 = vector.load %arg4[%c1, %c0_42] : memref<16x128xf32, #tpu.memory_space<vmem>>, vector<1x64xf32>
    %151 = vector.broadcast %150 : vector<1x64xf32> to vector<16x64xf32>
    %152 = arith.addf %149, %151 : vector<16x64xf32>
    %cst_43 = arith.constant 0.000000e+00 : f32
    %153 = vector.broadcast %cst_43 : f32 to vector<16x64xf32>
    %154 = arith.maximumf %152, %153 : vector<16x64xf32>
    %c0_44 = arith.constant 0 : index
    %c0_45 = arith.constant 0 : index
    %155 = vector.load %arg3[%c0_44, %c0_45] : memref<64x32xf32, #tpu.memory_space<vmem>>, vector<64x32xf32>
    %cst_46 = arith.constant dense<0.000000e+00> : vector<16x32xf32>
    %156 = tpu.matmul %154, %155, %cst_46 {dimension_numbers = #tpu.dot_dimension_numbers<[1], [0], [0], [1], [0, 0, 1, 1], [], []>} : vector<16x64xf32>, vector<64x32xf32>, vector<16x32xf32> -> vector<16x32xf32>
    %c2 = arith.constant 2 : index
    %c0_47 = arith.constant 0 : index
    %157 = vector.load %arg4[%c2, %c0_47] : memref<16x128xf32, #tpu.memory_space<vmem>>, vector<1x32xf32>
    %158 = vector.broadcast %157 : vector<1x32xf32> to vector<16x32xf32>
    %159 = arith.addf %156, %158 : vector<16x32xf32>
    %160 = arith.addf %125, %159 : vector<16x32xf32>
    %c0_48 = arith.constant 0 : index
    %c0_49 = arith.constant 0 : index
    %161 = vector.load %arg5[%c0_48, %c0_49] : memref<16x32xf32, #tpu.memory_space<vmem>>, vector<16x32xf32>
    tpu.vector_store %arg5[%c0_48, %c0_49], %160 {strides = array<i32>} : memref<16x32xf32, #tpu.memory_space<vmem>>, vector<16x32xf32>,
    return
  }
  func.func @transform_0(%arg0: i32) -> (i32, i32) {
    %c0_i32 = arith.constant 0 : i32
    %c0_i32_0 = arith.constant 0 : i32
    return %arg0, %c0_i32 : i32, i32
  }
  func.func @transform_1(%arg0: i32) -> (i32, i32) {
    %c0_i32 = arith.constant 0 : i32
    %c0_i32_0 = arith.constant 0 : i32
    %c0_i32_1 = arith.constant 0 : i32
    return %c0_i32, %c0_i32_0 : i32, i32
  }
  func.func @transform_2(%arg0: i32) -> (i32, i32) {
    %c0_i32 = arith.constant 0 : i32
    %c0_i32_0 = arith.constant 0 : i32
    %c0_i32_1 = arith.constant 0 : i32
    return %c0_i32, %c0_i32_0 : i32, i32
  }
  func.func @transform_3(%arg0: i32) -> (i32, i32) {
    %c0_i32 = arith.constant 0 : i32
    %c0_i32_0 = arith.constant 0 : i32
    %c0_i32_1 = arith.constant 0 : i32
    return %c0_i32, %c0_i32_0 : i32, i32
  }
  func.func @transform_4(%arg0: i32) -> (i32, i32) {
    %c0_i32 = arith.constant 0 : i32
    %c0_i32_0 = arith.constant 0 : i32
    return %arg0, %c0_i32 : i32, i32
  }
}

</mosaic_0001>

<llo_original>
// kernel: rpe_self_attention.1
$region0: #{rpe_self_attention.1}
  #allocation0 [shape = 'u32[]', space=smem, size = 0x4, offset = 0x4, fixed_abs, tag = 'smem constant byte address 0x4 - core index']
  #allocation1 [shape = 'u32[144,128]{1,0:T(1,128)}', space=vmem, size = 0x12000, scoped, tag = 'internal scratch']
  %s0 = inlined_call_operand.vmem [shape: f32[16,32], index: 0, kind: input, shape index: {}]
  %s1 = inlined_call_operand.vmem [shape: f32[32,160], index: 1, kind: input, shape index: {}]
  %s2 = inlined_call_operand.vmem [shape: f32[64,32], index: 2, kind: input, shape index: {}]
  %s3 = inlined_call_operand.vmem [shape: f32[16,128], index: 3, kind: input, shape index: {}]
  %s4 = inlined_call_operand.vmem [shape: f32[16,32], index: 4, kind: output, shape index: {}]
  %s5 = sld [smem:[#allocation0]]
  $region26: #{rpe_self_attention.1} parent=0
    _
  %s7 = ssub.s32 1, %s5
  %s8 = scalar_select 0, %s7, %s5
  // Predicated region
  $region2: #{rpe_self_attention.1} parent=0 // pred_check
    _
  $region3: #{rpe_self_attention.1} parent=0 // pred_check_branch
    %10 = sbr.rel (0) target = $region5
  $region4: #{rpe_self_attention.1} parent=0 // pred_region
    _
  $region5: #{rpe_self_attention.1} parent=0 // pred_fallthru
    _
  // Predicated region
  $region6: #{rpe_self_attention.1} parent=0 // pred_check
    _
  $region7: #{rpe_self_attention.1} parent=0 // pred_check_branch
    %12 = sbr.rel (0) target = $region9
  $region8: #{rpe_self_attention.1} parent=0 // pred_region
    _
  $region9: #{rpe_self_attention.1} parent=0 // pred_fallthru
    _
  // Predicated region
  $region10: #{rpe_self_attention.1} parent=0 // pred_check
    _
  $region11: #{rpe_self_attention.1} parent=0 // pred_check_branch
    %14 = sbr.rel (0) target = $region13
  $region12: #{rpe_self_attention.1} parent=0 // pred_region
    _
  $region13: #{rpe_self_attention.1} parent=0 // pred_fallthru
    _
  // Predicated region
  $region14: #{rpe_self_attention.1} parent=0 // pred_check
    _
  $region15: #{rpe_self_attention.1} parent=0 // pred_check_branch
    %16 = sbr.rel (0) target = $region17
  $region16: #{rpe_self_attention.1} parent=0 // pred_region
    _
  $region17: #{rpe_self_attention.1} parent=0 // pred_fallthru
    _
  %v17 = vld [vmem:[%s0] sm:$0xff]
  %v18 = vld [vmem:[%s0 + $0x8] sm:$0xff]
  %v19 = vld [vmem:[%s3 + $0x3] sm:$0x1]
  %v20 = vld [vmem:[%s3 + $0x4] sm:$0x1]
  %v21 = vld [vmem:[%s3 + $0x5] sm:$0x1]
  %v22 = vld [vmem:[%s3 + $0x6] sm:$0x1]
  %vm23 = vcmask 261120
  %v24 = vsel %vm23, %v17, 0.0
  %25 = vadd.xlane.f32.xlu0 %v24
  %v26 = vpop.xlane.xlu0 %25
  %v27 = vsel %vm23, %v18, 0.0
  %28 = vadd.xlane.f32.xlu0 %v27
  %v29 = vpop.xlane.xlu0 %28
  %v30 = vrcp.pop 32.0
  %v31 = vmul.f32 %v26, %v30
  %v32 = vmul.f32 %v29, %v30
  %v33 = vsub.f32 %v17, %v31
  %v34 = vsub.f32 %v18, %v32
  %v35 = vmul.f32 %v33, %v33
  %v36 = vmul.f32 %v34, %v34
  %v37 = vsel %vm23, %v35, 0.0
  %38 = vadd.xlane.f32.xlu0 %v37
  %v39 = vpop.xlane.xlu0 %38
  %v40 = vsel %vm23, %v36, 0.0
  %41 = vadd.xlane.f32.xlu0 %v40
  %v42 = vpop.xlane.xlu0 %41
  %v43 = vmul.f32 %v39, %v30
  %v44 = vmul.f32 %v42, %v30
  %v45 = vadd.f32 %v43, 1e-05
  %v46 = vadd.f32 %v44, 1e-05
  %v47 = vrsqrt.pop %v45
  %v48 = vrsqrt.pop %v46
  %v49 = vmul.f32 %v33, %v47
  %v50 = vmul.f32 %v34, %v48
  %v51 = vlaneseq
  %v52 = vshrl.u32 %v51, 7
  %v53 = vsub.s32 0, %v52
  %v54 = vrot.slane %v19, %v53
  %v55 = vmul.f32 %v49, %v54
  %v56 = vmul.f32 %v50, %v54
  %v57 = vlaneseq
  %v58 = vshrl.u32 %v57, 7
  %v59 = vsub.s32 0, %v58
  %v60 = vrot.slane %v20, %v59
  %v61 = vadd.f32 %v55, %v60
  %v62 = vadd.f32 %v56, %v60
  %v63 = vld [vmem:[%s1] sm:$0xff]
  %v64 = vld [vmem:[%s1 + $0x10] sm:$0xff]
  %v65 = vld [vmem:[%s1 + $0x20] sm:$0xff]
  %v66 = vld [vmem:[%s1 + $0x30] sm:$0xff]
  %v67 = vld [vmem:[%s3] sm:$0x1]
  %v68 = vlaneseq
  %v69 = vshrl.u32 %v68, 7
  %v70 = vsub.s32 0, %v69
  %v71 = vrot.slane %v67, %v70
  %v73 = vsel %vm23, %v61, 0
  %v76 = vsel %vm23, %v62, 0
  %78 = vmatprep.subr.mxu0 0.0
  %79 = vmatpush1.msra.mxu0 %v63
  %80 = vmatprep.subr.mxu0 0.0
  %81 = vmatpush1.msra.mxu0 %v64
  %82 = vmatprep.subr.mxu0 0.0
  %83 = vmatpush1.msra.mxu0 %v65
  %84 = vmatprep.subr.mxu0 0.0
  %85 = vmatpush1.msra.mxu0 %v66
  %86 = vmatprep.subr.mxu0 0.0
  %87 = vmatpush1.msra.mxu0 0.0
  %88 = vmatprep.subr.mxu0 0.0
  %89 = vmatpush1.msra.mxu0 0.0
  %90 = vmatprep.subr.mxu0 0.0
  %91 = vmatpush1.msra.mxu0 0.0
  %92 = vmatprep.subr.mxu0 0.0
  %93 = vmatpush1.msra.mxu0 0.0
  %94 = vmatprep.subr.mxu0 0.0
  %95 = vmatpush1.msra.mxu0 0.0
  %96 = vmatprep.subr.mxu0 0.0
  %97 = vmatpush1.msra.mxu0 0.0
  %98 = vmatprep.subr.mxu0 0.0
  %99 = vmatpush1.msra.mxu0 0.0
  %100 = vmatprep.subr.mxu0 0.0
  %101 = vmatpush1.msra.mxu0 0.0
  %102 = vmatprep.subr.mxu0 0.0
  %103 = vmatpush1.msra.mxu0 0.0
  %104 = vmatprep.subr.mxu0 0.0
  %105 = vmatpush1.msra.mxu0 0.0
  %106 = vmatprep.subr.mxu0 0.0
  %107 = vmatpush1.msra.mxu0 0.0
  %108 = vmatprep.subr.mxu0 0.0
  %109 = vmatpush1.msra.mxu0 0.0
  %110 = vmatprep.subr.mxu0 0.0
  %111 = vmatpush1.msra.mxu0 0.0
  %112 = vmatprep.subr.mxu0 0.0
  %113 = vmatpush1.msra.mxu0 0.0
  %114 = vmatprep.subr.mxu0 0.0
  %115 = vmatpush1.msra.mxu0 0.0
  %116 = vmatprep.subr.mxu0 0.0
  %117 = vmatpush1.msra.mxu0 0.0
  %118 = vmatprep.subr.mxu0 0.0
  %119 = vmatpush1.msra.mxu0 0.0
  %120 = vmatprep.subr.mxu0 0.0
  %121 = vmatpush1.msra.mxu0 0.0
  %122 = vmatprep.subr.mxu0 0.0
  %123 = vmatpush1.msra.mxu0 0.0
  %124 = vmatprep.subr.mxu0 0.0
  %125 = vmatpush1.msra.mxu0 0.0
  %126 = vmatprep.subr.mxu0 0.0
  %127 = vmatpush1.msra.mxu0 0.0
  %128 = vmatprep.subr.mxu0 0.0
  %129 = vmatpush1.msra.mxu0 0.0
  %130 = vmatprep.subr.mxu0 0.0
  %131 = vmatpush1.msra.mxu0 0.0
  %132 = vmatprep.subr.mxu0 0.0
  %133 = vmatpush1.msra.mxu0 0.0
  %134 = vmatprep.subr.mxu0 0.0
  %135 = vmatpush1.msra.mxu0 0.0
  %136 = vmatprep.subr.mxu0 0.0
  %137 = vmatpush1.msra.mxu0 0.0
  %138 = vmatprep.subr.mxu0 0.0
  %139 = vmatpush1.msra.mxu0 0.0
  %140 = vmatprep.subr.mxu0 0.0
  %141 = vmatpush1.msra.mxu0 0.0
  %142 = vmatprep.mubr.f32.mxu0 0.0
  %143 = vmatmul.mubr.f32.gmra.mrb[0].mxu0 %v73
  %v144 = vpop.f32.mrb[0].mxu0
  %v145 = vadd.f32 %v71, %v144
  %v146 = vpop.f32.mrb[0].mxu0
  %147 = vmatprep.mubr.f32.mxu0 0.0
  %148 = vmatmul.mubr.f32.gmra.mrb[0].mxu0 %v76
  %v149 = vpop.f32.mrb[0].mxu0
  %v150 = vadd.f32 %v71, %v149
  %v151 = vpop.f32.mrb[0].mxu0
  %152 = vdwg.mxu0
  %v153 = vld [vmem:[%s3 + $0x8] sm:$0xff]
  %155 = vrot.lane.b32.xlu0 %v145, 96
  %v156 = vpop.permute.xlu0 %155
  %vm157 = vcmask 64512
  %v158 = vsel %vm157, %v145, 0
  %v160 = vsel %vm157, %v156, 0
  %162 = vmatprep.subr.mxu0 0.0
  %163 = vmatpush1.xpose.msra.mxu0 %v160
  %164 = vmatprep.subr.mxu0 0.0
  %165 = vmatpush1.xpose.msra.mxu0 0.0
  %166 = vmatprep.subr.mxu0 0.0
  %167 = vmatpush1.xpose.msra.mxu0 0.0
  %168 = vmatprep.subr.mxu0 0.0
  %169 = vmatpush1.xpose.msra.mxu0 0.0
  %170 = vmatprep.subr.mxu0 0.0
  %171 = vmatpush1.xpose.msra.mxu0 0.0
  %172 = vmatprep.subr.mxu0 0.0
  %173 = vmatpush1.xpose.msra.mxu0 0.0
  %174 = vmatprep.subr.mxu0 0.0
  %175 = vmatpush1.xpose.msra.mxu0 0.0
  %176 = vmatprep.subr.mxu0 0.0
  %177 = vmatpush1.xpose.msra.mxu0 0.0
  %178 = vmatprep.subr.mxu0 0.0
  %179 = vmatpush1.xpose.msra.mxu0 0.0
  %180 = vmatprep.subr.mxu0 0.0
  %181 = vmatpush1.xpose.msra.mxu0 0.0
  %182 = vmatprep.subr.mxu0 0.0
  %183 = vmatpush1.xpose.msra.mxu0 0.0
  %184 = vmatprep.subr.mxu0 0.0
  %185 = vmatpush1.xpose.msra.mxu0 0.0
  %186 = vmatprep.subr.mxu0 0.0
  %187 = vmatpush1.xpose.msra.mxu0 0.0
  %188 = vmatprep.subr.mxu0 0.0
  %189 = vmatpush1.xpose.msra.mxu0 0.0
  %190 = vmatprep.subr.mxu0 0.0
  %191 = vmatpush1.xpose.msra.mxu0 0.0
  %192 = vmatprep.subr.mxu0 0.0
  %193 = vmatpush1.xpose.msra.mxu0 0.0
  %194 = vmatprep.subr.mxu0 0.0
  %195 = vmatpush1.xpose.msra.mxu0 0.0
  %196 = vmatprep.subr.mxu0 0.0
  %197 = vmatpush1.xpose.msra.mxu0 0.0
  %198 = vmatprep.subr.mxu0 0.0
  %199 = vmatpush1.xpose.msra.mxu0 0.0
  %200 = vmatprep.subr.mxu0 0.0
  %201 = vmatpush1.xpose.msra.mxu0 0.0
  %202 = vmatprep.subr.mxu0 0.0
  %203 = vmatpush1.xpose.msra.mxu0 0.0
  %204 = vmatprep.subr.mxu0 0.0
  %205 = vmatpush1.xpose.msra.mxu0 0.0
  %206 = vmatprep.subr.mxu0 0.0
  %207 = vmatpush1.xpose.msra.mxu0 0.0
  %208 = vmatprep.subr.mxu0 0.0
  %209 = vmatpush1.xpose.msra.mxu0 0.0
  %210 = vmatprep.subr.mxu0 0.0
  %211 = vmatpush1.xpose.msra.mxu0 0.0
  %212 = vmatprep.subr.mxu0 0.0
  %213 = vmatpush1.xpose.msra.mxu0 0.0
  %214 = vmatprep.subr.mxu0 0.0
  %215 = vmatpush1.xpose.msra.mxu0 0.0
  %216 = vmatprep.subr.mxu0 0.0
  %217 = vmatpush1.xpose.msra.mxu0 0.0
  %218 = vmatprep.subr.mxu0 0.0
  %219 = vmatpush1.xpose.msra.mxu0 0.0
  %220 = vmatprep.subr.mxu0 0.0
  %221 = vmatpush1.xpose.msra.mxu0 0.0
  %222 = vmatprep.subr.mxu0 0.0
  %223 = vmatpush1.xpose.msra.mxu0 0.0
  %224 = vmatprep.subr.mxu0 0.0
  %225 = vmatpush1.xpose.msra.mxu0 0.0
  %226 = vmatprep.mubr.f32.mxu0 0.0
  %227 = vmatmul.mubr.f32.gmra.mrb[0].mxu0 %v158
  %v228 = vpop.f32.mrb[0].mxu0
  %v229 = vadd.f32 %v153, %v228
  %v230 = vpop.f32.mrb[0].mxu0
  %231 = vdwg.mxu0
  %233 = vrot.lane.b32.xlu0 %v150, 96
  %v234 = vpop.permute.xlu0 %233
  %v235 = vsel %vm157, %v150, 0
  %v237 = vsel %vm157, %v234, 0
  %239 = vmatprep.subr.mxu0 0.0
  %240 = vmatpush1.xpose.msra.mxu0 %v237
  %241 = vmatprep.subr.mxu0 0.0
  %242 = vmatpush1.xpose.msra.mxu0 0.0
  %243 = vmatprep.subr.mxu0 0.0
  %244 = vmatpush1.xpose.msra.mxu0 0.0
  %245 = vmatprep.subr.mxu0 0.0
  %246 = vmatpush1.xpose.msra.mxu0 0.0
  %247 = vmatprep.subr.mxu0 0.0
  %248 = vmatpush1.xpose.msra.mxu0 0.0
  %249 = vmatprep.subr.mxu0 0.0
  %250 = vmatpush1.xpose.msra.mxu0 0.0
  %251 = vmatprep.subr.mxu0 0.0
  %252 = vmatpush1.xpose.msra.mxu0 0.0
  %253 = vmatprep.subr.mxu0 0.0
  %254 = vmatpush1.xpose.msra.mxu0 0.0
  %255 = vmatprep.subr.mxu0 0.0
  %256 = vmatpush1.xpose.msra.mxu0 0.0
  %257 = vmatprep.subr.mxu0 0.0
  %258 = vmatpush1.xpose.msra.mxu0 0.0
  %259 = vmatprep.subr.mxu0 0.0
  %260 = vmatpush1.xpose.msra.mxu0 0.0
  %261 = vmatprep.subr.mxu0 0.0
  %262 = vmatpush1.xpose.msra.mxu0 0.0
  %263 = vmatprep.subr.mxu0 0.0
  %264 = vmatpush1.xpose.msra.mxu0 0.0
  %265 = vmatprep.subr.mxu0 0.0
  %266 = vmatpush1.xpose.msra.mxu0 0.0
  %267 = vmatprep.subr.mxu0 0.0
  %268 = vmatpush1.xpose.msra.mxu0 0.0
  %269 = vmatprep.subr.mxu0 0.0
  %270 = vmatpush1.xpose.msra.mxu0 0.0
  %271 = vmatprep.subr.mxu0 0.0
  %272 = vmatpush1.xpose.msra.mxu0 0.0
  %273 = vmatprep.subr.mxu0 0.0
  %274 = vmatpush1.xpose.msra.mxu0 0.0
  %275 = vmatprep.subr.mxu0 0.0
  %276 = vmatpush1.xpose.msra.mxu0 0.0
  %277 = vmatprep.subr.mxu0 0.0
  %278 = vmatpush1.xpose.msra.mxu0 0.0
  %279 = vmatprep.subr.mxu0 0.0
  %280 = vmatpush1.xpose.msra.mxu0 0.0
  %281 = vmatprep.subr.mxu0 0.0
  %282 = vmatpush1.xpose.msra.mxu0 0.0
  %283 = vmatprep.subr.mxu0 0.0
  %284 = vmatpush1.xpose.msra.mxu0 0.0
  %285 = vmatprep.subr.mxu0 0.0
  %286 = vmatpush1.xpose.msra.mxu0 0.0
  %287 = vmatprep.subr.mxu0 0.0
  %288 = vmatpush1.xpose.msra.mxu0 0.0
  %289 = vmatprep.subr.mxu0 0.0
  %290 = vmatpush1.xpose.msra.mxu0 0.0
  %291 = vmatprep.subr.mxu0 0.0
  %292 = vmatpush1.xpose.msra.mxu0 0.0
  %293 = vmatprep.subr.mxu0 0.0
  %294 = vmatpush1.xpose.msra.mxu0 0.0
  %295 = vmatprep.subr.mxu0 0.0
  %296 = vmatpush1.xpose.msra.mxu0 0.0
  %297 = vmatprep.subr.mxu0 0.0
  %298 = vmatpush1.xpose.msra.mxu0 0.0
  %299 = vmatprep.subr.mxu0 0.0
  %300 = vmatpush1.xpose.msra.mxu0 0.0
  %301 = vmatprep.subr.mxu0 0.0
  %302 = vmatpush1.xpose.msra.mxu0 0.0
  %303 = vmatprep.mubr.f32.mxu0 0.0
  %304 = vmatmul.mubr.f32.gmra.mrb[0].mxu0 %v235
  %v305 = vpop.f32.mrb[0].mxu0
  %v306 = vadd.f32 %v153, %v305
  %v307 = vpop.f32.mrb[0].mxu0
  %308 = vdwg.mxu0
  %v309 = vsel %vm157, %v229, -inf
  %310 = vmax.xlane.f32.xlu0 %v309
  %v311 = vpop.xlane.xlu0 %310
  %v312 = vsel %vm157, %v306, -inf
  %313 = vmax.xlane.f32.xlu0 %v312
  %v314 = vpop.xlane.xlu0 %313
  %v315 = vsub.f32 %v229, %v311
  %v316 = vsub.f32 %v306, %v314
  %v317 = vmul.f32 %v315, 1.442695
  %v318 = vpow.pop %v317
  %v319 = vmul.f32 %v316, 1.442695
  %v320 = vpow.pop %v319
  %v321 = vsel %vm157, %v318, 0.0
  %322 = vadd.xlane.f32.xlu0 %v321
  %v323 = vpop.xlane.xlu0 %322
  %v324 = vsel %vm157, %v320, 0.0
  %325 = vadd.xlane.f32.xlu0 %v324
  %v326 = vpop.xlane.xlu0 %325
  %v327 = vrcp.pop %v323
  %v328 = vrcp.pop %v326
  %v329 = vmul.f32 %v318, %v327
  %v330 = vmul.f32 %v320, %v328
  %331 = vrot.lane.b32.xlu0 %v145, 64
  %v332 = vpop.permute.xlu0 %331
  %v335 = vsel %vm157, %v329, 0
  %337 = vmatprep.subr.mxu0 0.0
  %338 = vmatpush1.msra.mxu0 %v332
  %339 = vmatprep.subr.mxu0 0.0
  %340 = vmatpush1.msra.mxu0 0.0
  %341 = vmatprep.subr.mxu0 0.0
  %342 = vmatpush1.msra.mxu0 0.0
  %343 = vmatprep.subr.mxu0 0.0
  %344 = vmatpush1.msra.mxu0 0.0
  %345 = vmatprep.subr.mxu0 0.0
  %346 = vmatpush1.msra.mxu0 0.0
  %347 = vmatprep.subr.mxu0 0.0
  %348 = vmatpush1.msra.mxu0 0.0
  %349 = vmatprep.subr.mxu0 0.0
  %350 = vmatpush1.msra.mxu0 0.0
  %351 = vmatprep.subr.mxu0 0.0
  %352 = vmatpush1.msra.mxu0 0.0
  %353 = vmatprep.subr.mxu0 0.0
  %354 = vmatpush1.msra.mxu0 0.0
  %355 = vmatprep.subr.mxu0 0.0
  %356 = vmatpush1.msra.mxu0 0.0
  %357 = vmatprep.subr.mxu0 0.0
  %358 = vmatpush1.msra.mxu0 0.0
  %359 = vmatprep.subr.mxu0 0.0
  %360 = vmatpush1.msra.mxu0 0.0
  %361 = vmatprep.subr.mxu0 0.0
  %362 = vmatpush1.msra.mxu0 0.0
  %363 = vmatprep.subr.mxu0 0.0
  %364 = vmatpush1.msra.mxu0 0.0
  %365 = vmatprep.subr.mxu0 0.0
  %366 = vmatpush1.msra.mxu0 0.0
  %367 = vmatprep.subr.mxu0 0.0
  %368 = vmatpush1.msra.mxu0 0.0
  %369 = vmatprep.subr.mxu0 0.0
  %370 = vmatpush1.msra.mxu0 0.0
  %371 = vmatprep.subr.mxu0 0.0
  %372 = vmatpush1.msra.mxu0 0.0
  %373 = vmatprep.subr.mxu0 0.0
  %374 = vmatpush1.msra.mxu0 0.0
  %375 = vmatprep.subr.mxu0 0.0
  %376 = vmatpush1.msra.mxu0 0.0
  %377 = vmatprep.subr.mxu0 0.0
  %378 = vmatpush1.msra.mxu0 0.0
  %379 = vmatprep.subr.mxu0 0.0
  %380 = vmatpush1.msra.mxu0 0.0
  %381 = vmatprep.subr.mxu0 0.0
  %382 = vmatpush1.msra.mxu0 0.0
  %383 = vmatprep.subr.mxu0 0.0
  %384 = vmatpush1.msra.mxu0 0.0
  %385 = vmatprep.subr.mxu0 0.0
  %386 = vmatpush1.msra.mxu0 0.0
  %387 = vmatprep.subr.mxu0 0.0
  %388 = vmatpush1.msra.mxu0 0.0
  %389 = vmatprep.subr.mxu0 0.0
  %390 = vmatpush1.msra.mxu0 0.0
  %391 = vmatprep.subr.mxu0 0.0
  %392 = vmatpush1.msra.mxu0 0.0
  %393 = vmatprep.subr.mxu0 0.0
  %394 = vmatpush1.msra.mxu0 0.0
  %395 = vmatprep.subr.mxu0 0.0
  %396 = vmatpush1.msra.mxu0 0.0
  %397 = vmatprep.subr.mxu0 0.0
  %398 = vmatpush1.msra.mxu0 0.0
  %399 = vmatprep.subr.mxu0 0.0
  %400 = vmatpush1.msra.mxu0 0.0
  %401 = vmatprep.mubr.f32.mxu0 0.0
  %402 = vmatmul.mubr.f32.gmra.mrb[0].mxu0 %v335
  %v403 = vpop.f32.mrb[0].mxu0
  %v404 = vadd.f32 0.0, %v403
  %v405 = vpop.f32.mrb[0].mxu0
  %406 = vdwg.mxu0
  %407 = vrot.lane.b32.xlu0 %v150, 64
  %v408 = vpop.permute.xlu0 %407
  %v411 = vsel %vm157, %v330, 0
  %413 = vmatprep.subr.mxu0 0.0
  %414 = vmatpush1.msra.mxu0 %v408
  %415 = vmatprep.subr.mxu0 0.0
  %416 = vmatpush1.msra.mxu0 0.0
  %417 = vmatprep.subr.mxu0 0.0
  %418 = vmatpush1.msra.mxu0 0.0
  %419 = vmatprep.subr.mxu0 0.0
  %420 = vmatpush1.msra.mxu0 0.0
  %421 = vmatprep.subr.mxu0 0.0
  %422 = vmatpush1.msra.mxu0 0.0
  %423 = vmatprep.subr.mxu0 0.0
  %424 = vmatpush1.msra.mxu0 0.0
  %425 = vmatprep.subr.mxu0 0.0
  %426 = vmatpush1.msra.mxu0 0.0
  %427 = vmatprep.subr.mxu0 0.0
  %428 = vmatpush1.msra.mxu0 0.0
  %429 = vmatprep.subr.mxu0 0.0
  %430 = vmatpush1.msra.mxu0 0.0
  %431 = vmatprep.subr.mxu0 0.0
  %432 = vmatpush1.msra.mxu0 0.0
  %433 = vmatprep.subr.mxu0 0.0
  %434 = vmatpush1.msra.mxu0 0.0
  %435 = vmatprep.subr.mxu0 0.0
  %436 = vmatpush1.msra.mxu0 0.0
  %437 = vmatprep.subr.mxu0 0.0
  %438 = vmatpush1.msra.mxu0 0.0
  %439 = vmatprep.subr.mxu0 0.0
  %440 = vmatpush1.msra.mxu0 0.0
  %441 = vmatprep.subr.mxu0 0.0
  %442 = vmatpush1.msra.mxu0 0.0
  %443 = vmatprep.subr.mxu0 0.0
  %444 = vmatpush1.msra.mxu0 0.0
  %445 = vmatprep.subr.mxu0 0.0
  %446 = vmatpush1.msra.mxu0 0.0
  %447 = vmatprep.subr.mxu0 0.0
  %448 = vmatpush1.msra.mxu0 0.0
  %449 = vmatprep.subr.mxu0 0.0
  %450 = vmatpush1.msra.mxu0 0.0
  %451 = vmatprep.subr.mxu0 0.0
  %452 = vmatpush1.msra.mxu0 0.0
  %453 = vmatprep.subr.mxu0 0.0
  %454 = vmatpush1.msra.mxu0 0.0
  %455 = vmatprep.subr.mxu0 0.0
  %456 = vmatpush1.msra.mxu0 0.0
  %457 = vmatprep.subr.mxu0 0.0
  %458 = vmatpush1.msra.mxu0 0.0
  %459 = vmatprep.subr.mxu0 0.0
  %460 = vmatpush1.msra.mxu0 0.0
  %461 = vmatprep.subr.mxu0 0.0
  %462 = vmatpush1.msra.mxu0 0.0
  %463 = vmatprep.subr.mxu0 0.0
  %464 = vmatpush1.msra.mxu0 0.0
  %465 = vmatprep.subr.mxu0 0.0
  %466 = vmatpush1.msra.mxu0 0.0
  %467 = vmatprep.subr.mxu0 0.0
  %468 = vmatpush1.msra.mxu0 0.0
  %469 = vmatprep.subr.mxu0 0.0
  %470 = vmatpush1.msra.mxu0 0.0
  %471 = vmatprep.subr.mxu0 0.0
  %472 = vmatpush1.msra.mxu0 0.0
  %473 = vmatprep.subr.mxu0 0.0
  %474 = vmatpush1.msra.mxu0 0.0
  %475 = vmatprep.subr.mxu0 0.0
  %476 = vmatpush1.msra.mxu0 0.0
  %477 = vmatprep.mubr.f32.mxu0 0.0
  %478 = vmatmul.mubr.f32.gmra.mrb[0].mxu0 %v411
  %v479 = vpop.f32.mrb[0].mxu0
  %v480 = vadd.f32 0.0, %v479
  %v481 = vpop.f32.mrb[0].mxu0
  %482 = vdwg.mxu0
  %v483 = vld [vmem:[%s3 + $0x8] sm:$0xff]
  %484 = vrot.lane.b32.xlu0 %v145, 120
  %v485 = vpop.permute.xlu0 %484
  %486 = vrot.lane.b32.xlu0 %v145, 88
  %v487 = vpop.permute.xlu0 %486
  %489 = vrot.lane.b32.xlu0 %v483, 120
  %v490 = vpop.permute.xlu0 %489
  %v492 = vsel %vm157, %v485, 0
  %v494 = vsel %vm157, %v487, 0
  %496 = vmatprep.subr.mxu0 0.0
  %497 = vmatpush1.xpose.msra.mxu0 %v494
  %498 = vmatprep.subr.mxu0 0.0
  %499 = vmatpush1.xpose.msra.mxu0 0.0
  %500 = vmatprep.subr.mxu0 0.0
  %501 = vmatpush1.xpose.msra.mxu0 0.0
  %502 = vmatprep.subr.mxu0 0.0
  %503 = vmatpush1.xpose.msra.mxu0 0.0
  %504 = vmatprep.subr.mxu0 0.0
  %505 = vmatpush1.xpose.msra.mxu0 0.0
  %506 = vmatprep.subr.mxu0 0.0
  %507 = vmatpush1.xpose.msra.mxu0 0.0
  %508 = vmatprep.subr.mxu0 0.0
  %509 = vmatpush1.xpose.msra.mxu0 0.0
  %510 = vmatprep.subr.mxu0 0.0
  %511 = vmatpush1.xpose.msra.mxu0 0.0
  %512 = vmatprep.subr.mxu0 0.0
  %513 = vmatpush1.xpose.msra.mxu0 0.0
  %514 = vmatprep.subr.mxu0 0.0
  %515 = vmatpush1.xpose.msra.mxu0 0.0
  %516 = vmatprep.subr.mxu0 0.0
  %517 = vmatpush1.xpose.msra.mxu0 0.0
  %518 = vmatprep.subr.mxu0 0.0
  %519 = vmatpush1.xpose.msra.mxu0 0.0
  %520 = vmatprep.subr.mxu0 0.0
  %521 = vmatpush1.xpose.msra.mxu0 0.0
  %522 = vmatprep.subr.mxu0 0.0
  %523 = vmatpush1.xpose.msra.mxu0 0.0
  %524 = vmatprep.subr.mxu0 0.0
  %525 = vmatpush1.xpose.msra.mxu0 0.0
  %526 = vmatprep.subr.mxu0 0.0
  %527 = vmatpush1.xpose.msra.mxu0 0.0
  %528 = vmatprep.subr.mxu0 0.0
  %529 = vmatpush1.xpose.msra.mxu0 0.0
  %530 = vmatprep.subr.mxu0 0.0
  %531 = vmatpush1.xpose.msra.mxu0 0.0
  %532 = vmatprep.subr.mxu0 0.0
  %533 = vmatpush1.xpose.msra.mxu0 0.0
  %534 = vmatprep.subr.mxu0 0.0
  %535 = vmatpush1.xpose.msra.mxu0 0.0
  %536 = vmatprep.subr.mxu0 0.0
  %537 = vmatpush1.xpose.msra.mxu0 0.0
  %538 = vmatprep.subr.mxu0 0.0
  %539 = vmatpush1.xpose.msra.mxu0 0.0
  %540 = vmatprep.subr.mxu0 0.0
  %541 = vmatpush1.xpose.msra.mxu0 0.0
  %542 = vmatprep.subr.mxu0 0.0
  %543 = vmatpush1.xpose.msra.mxu0 0.0
  %544 = vmatprep.subr.mxu0 0.0
  %545 = vmatpush1.xpose.msra.mxu0 0.0
  %546 = vmatprep.subr.mxu0 0.0
  %547 = vmatpush1.xpose.msra.mxu0 0.0
  %548 = vmatprep.subr.mxu0 0.0
  %549 = vmatpush1.xpose.msra.mxu0 0.0
  %550 = vmatprep.subr.mxu0 0.0
  %551 = vmatpush1.xpose.msra.mxu0 0.0
  %552 = vmatprep.subr.mxu0 0.0
  %553 = vmatpush1.xpose.msra.mxu0 0.0
  %554 = vmatprep.subr.mxu0 0.0
  %555 = vmatpush1.xpose.msra.mxu0 0.0
  %556 = vmatprep.subr.mxu0 0.0
  %557 = vmatpush1.xpose.msra.mxu0 0.0
  %558 = vmatprep.subr.mxu0 0.0
  %559 = vmatpush1.xpose.msra.mxu0 0.0
  %560 = vmatprep.mubr.f32.mxu0 0.0
  %561 = vmatmul.mubr.f32.gmra.mrb[0].mxu0 %v492
  %v562 = vpop.f32.mrb[0].mxu0
  %v563 = vadd.f32 %v490, %v562
  %v564 = vpop.f32.mrb[0].mxu0
  %565 = vdwg.mxu0
  %566 = vrot.lane.b32.xlu0 %v150, 120
  %v567 = vpop.permute.xlu0 %566
  %568 = vrot.lane.b32.xlu0 %v150, 88
  %v569 = vpop.permute.xlu0 %568
  %v570 = vsel %vm157, %v567, 0
  %v572 = vsel %vm157, %v569, 0
  %574 = vmatprep.subr.mxu0 0.0
  %575 = vmatpush1.xpose.msra.mxu0 %v572
  %576 = vmatprep.subr.mxu0 0.0
  %577 = vmatpush1.xpose.msra.mxu0 0.0
  %578 = vmatprep.subr.mxu0 0.0
  %579 = vmatpush1.xpose.msra.mxu0 0.0
  %580 = vmatprep.subr.mxu0 0.0
  %581 = vmatpush1.xpose.msra.mxu0 0.0
  %582 = vmatprep.subr.mxu0 0.0
  %583 = vmatpush1.xpose.msra.mxu0 0.0
  %584 = vmatprep.subr.mxu0 0.0
  %585 = vmatpush1.xpose.msra.mxu0 0.0
  %586 = vmatprep.subr.mxu0 0.0
  %587 = vmatpush1.xpose.msra.mxu0 0.0
  %588 = vmatprep.subr.mxu0 0.0
  %589 = vmatpush1.xpose.msra.mxu0 0.0
  %590 = vmatprep.subr.mxu0 0.0
  %591 = vmatpush1.xpose.msra.mxu0 0.0
  %592 = vmatprep.subr.mxu0 0.0
  %593 = vmatpush1.xpose.msra.mxu0 0.0
  %594 = vmatprep.subr.mxu0 0.0
  %595 = vmatpush1.xpose.msra.mxu0 0.0
  %596 = vmatprep.subr.mxu0 0.0
  %597 = vmatpush1.xpose.msra.mxu0 0.0
  %598 = vmatprep.subr.mxu0 0.0
  %599 = vmatpush1.xpose.msra.mxu0 0.0
  %600 = vmatprep.subr.mxu0 0.0
  %601 = vmatpush1.xpose.msra.mxu0 0.0
  %602 = vmatprep.subr.mxu0 0.0
  %603 = vmatpush1.xpose.msra.mxu0 0.0
  %604 = vmatprep.subr.mxu0 0.0
  %605 = vmatpush1.xpose.msra.mxu0 0.0
  %606 = vmatprep.subr.mxu0 0.0
  %607 = vmatpush1.xpose.msra.mxu0 0.0
  %608 = vmatprep.subr.mxu0 0.0
  %609 = vmatpush1.xpose.msra.mxu0 0.0
  %610 = vmatprep.subr.mxu0 0.0
  %611 = vmatpush1.xpose.msra.mxu0 0.0
  %612 = vmatprep.subr.mxu0 0.0
  %613 = vmatpush1.xpose.msra.mxu0 0.0
  %614 = vmatprep.subr.mxu0 0.0
  %615 = vmatpush1.xpose.msra.mxu0 0.0
  %616 = vmatprep.subr.mxu0 0.0
  %617 = vmatpush1.xpose.msra.mxu0 0.0
  %618 = vmatprep.subr.mxu0 0.0
  %619 = vmatpush1.xpose.msra.mxu0 0.0
  %620 = vmatprep.subr.mxu0 0.0
  %621 = vmatpush1.xpose.msra.mxu0 0.0
  %622 = vmatprep.subr.mxu0 0.0
  %623 = vmatpush1.xpose.msra.mxu0 0.0
  %624 = vmatprep.subr.mxu0 0.0
  %625 = vmatpush1.xpose.msra.mxu0 0.0
  %626 = vmatprep.subr.mxu0 0.0
  %627 = vmatpush1.xpose.msra.mxu0 0.0
  %628 = vmatprep.subr.mxu0 0.0
  %629 = vmatpush1.xpose.msra.mxu0 0.0
  %630 = vmatprep.subr.mxu0 0.0
  %631 = vmatpush1.xpose.msra.mxu0 0.0
  %632 = vmatprep.subr.mxu0 0.0
  %633 = vmatpush1.xpose.msra.mxu0 0.0
  %634 = vmatprep.subr.mxu0 0.0
  %635 = vmatpush1.xpose.msra.mxu0 0.0
  %636 = vmatprep.subr.mxu0 0.0
  %637 = vmatpush1.xpose.msra.mxu0 0.0
  %638 = vmatprep.mubr.f32.mxu0 0.0
  %639 = vmatmul.mubr.f32.gmra.mrb[0].mxu0 %v570
  %v640 = vpop.f32.mrb[0].mxu0
  %v641 = vadd.f32 %v490, %v640
  %v642 = vpop.f32.mrb[0].mxu0
  %643 = vdwg.mxu0
  %v644 = vsel %vm157, %v563, -inf
  %645 = vmax.xlane.f32.xlu0 %v644
  %v646 = vpop.xlane.xlu0 %645
  %v647 = vsel %vm157, %v641, -inf
  %648 = vmax.xlane.f32.xlu0 %v647
  %v649 = vpop.xlane.xlu0 %648
  %v650 = vsub.f32 %v563, %v646
  %v651 = vsub.f32 %v641, %v649
  %v652 = vmul.f32 %v650, 1.442695
  %v653 = vpow.pop %v652
  %v654 = vmul.f32 %v651, 1.442695
  %v655 = vpow.pop %v654
  %v656 = vsel %vm157, %v653, 0.0
  %657 = vadd.xlane.f32.xlu0 %v656
  %v658 = vpop.xlane.xlu0 %657
  %v659 = vsel %vm157, %v655, 0.0
  %660 = vadd.xlane.f32.xlu0 %v659
  %v661 = vpop.xlane.xlu0 %660
  %v662 = vrcp.pop %v658
  %v663 = vrcp.pop %v661
  %v664 = vmul.f32 %v653, %v662
  %v665 = vmul.f32 %v655, %v663
  %666 = vrot.lane.b32.xlu0 %v145, 56
  %v667 = vpop.permute.xlu0 %666
  %v670 = vsel %vm157, %v664, 0
  %672 = vmatprep.subr.mxu0 0.0
  %673 = vmatpush1.msra.mxu0 %v667
  %674 = vmatprep.subr.mxu0 0.0
  %675 = vmatpush1.msra.mxu0 0.0
  %676 = vmatprep.subr.mxu0 0.0
  %677 = vmatpush1.msra.mxu0 0.0
  %678 = vmatprep.subr.mxu0 0.0
  %679 = vmatpush1.msra.mxu0 0.0
  %680 = vmatprep.subr.mxu0 0.0
  %681 = vmatpush1.msra.mxu0 0.0
  %682 = vmatprep.subr.mxu0 0.0
  %683 = vmatpush1.msra.mxu0 0.0
  %684 = vmatprep.subr.mxu0 0.0
  %685 = vmatpush1.msra.mxu0 0.0
  %686 = vmatprep.subr.mxu0 0.0
  %687 = vmatpush1.msra.mxu0 0.0
  %688 = vmatprep.subr.mxu0 0.0
  %689 = vmatpush1.msra.mxu0 0.0
  %690 = vmatprep.subr.mxu0 0.0
  %691 = vmatpush1.msra.mxu0 0.0
  %692 = vmatprep.subr.mxu0 0.0
  %693 = vmatpush1.msra.mxu0 0.0
  %694 = vmatprep.subr.mxu0 0.0
  %695 = vmatpush1.msra.mxu0 0.0
  %696 = vmatprep.subr.mxu0 0.0
  %697 = vmatpush1.msra.mxu0 0.0
  %698 = vmatprep.subr.mxu0 0.0
  %699 = vmatpush1.msra.mxu0 0.0
  %700 = vmatprep.subr.mxu0 0.0
  %701 = vmatpush1.msra.mxu0 0.0
  %702 = vmatprep.subr.mxu0 0.0
  %703 = vmatpush1.msra.mxu0 0.0
  %704 = vmatprep.subr.mxu0 0.0
  %705 = vmatpush1.msra.mxu0 0.0
  %706 = vmatprep.subr.mxu0 0.0
  %707 = vmatpush1.msra.mxu0 0.0
  %708 = vmatprep.subr.mxu0 0.0
  %709 = vmatpush1.msra.mxu0 0.0
  %710 = vmatprep.subr.mxu0 0.0
  %711 = vmatpush1.msra.mxu0 0.0
  %712 = vmatprep.subr.mxu0 0.0
  %713 = vmatpush1.msra.mxu0 0.0
  %714 = vmatprep.subr.mxu0 0.0
  %715 = vmatpush1.msra.mxu0 0.0
  %716 = vmatprep.subr.mxu0 0.0
  %717 = vmatpush1.msra.mxu0 0.0
  %718 = vmatprep.subr.mxu0 0.0
  %719 = vmatpush1.msra.mxu0 0.0
  %720 = vmatprep.subr.mxu0 0.0
  %721 = vmatpush1.msra.mxu0 0.0
  %722 = vmatprep.subr.mxu0 0.0
  %723 = vmatpush1.msra.mxu0 0.0
  %724 = vmatprep.subr.mxu0 0.0
  %725 = vmatpush1.msra.mxu0 0.0
  %726 = vmatprep.subr.mxu0 0.0
  %727 = vmatpush1.msra.mxu0 0.0
  %728 = vmatprep.subr.mxu0 0.0
  %729 = vmatpush1.msra.mxu0 0.0
  %730 = vmatprep.subr.mxu0 0.0
  %731 = vmatpush1.msra.mxu0 0.0
  %732 = vmatprep.subr.mxu0 0.0
  %733 = vmatpush1.msra.mxu0 0.0
  %734 = vmatprep.subr.mxu0 0.0
  %735 = vmatpush1.msra.mxu0 0.0
  %736 = vmatprep.mubr.f32.mxu0 0.0
  %737 = vmatmul.mubr.f32.gmra.mrb[0].mxu0 %v670
  %v738 = vpop.f32.mrb[0].mxu0
  %v739 = vadd.f32 0.0, %v738
  %v740 = vpop.f32.mrb[0].mxu0
  %741 = vdwg.mxu0
  %742 = vrot.lane.b32.xlu0 %v150, 56
  %v743 = vpop.permute.xlu0 %742
  %v746 = vsel %vm157, %v665, 0
  %748 = vmatprep.subr.mxu0 0.0
  %749 = vmatpush1.msra.mxu0 %v743
  %750 = vmatprep.subr.mxu0 0.0
  %751 = vmatpush1.msra.mxu0 0.0
  %752 = vmatprep.subr.mxu0 0.0
  %753 = vmatpush1.msra.mxu0 0.0
  %754 = vmatprep.subr.mxu0 0.0
  %755 = vmatpush1.msra.mxu0 0.0
  %756 = vmatprep.subr.mxu0 0.0
  %757 = vmatpush1.msra.mxu0 0.0
  %758 = vmatprep.subr.mxu0 0.0
  %759 = vmatpush1.msra.mxu0 0.0
  %760 = vmatprep.subr.mxu0 0.0
  %761 = vmatpush1.msra.mxu0 0.0
  %762 = vmatprep.subr.mxu0 0.0
  %763 = vmatpush1.msra.mxu0 0.0
  %764 = vmatprep.subr.mxu0 0.0
  %765 = vmatpush1.msra.mxu0 0.0
  %766 = vmatprep.subr.mxu0 0.0
  %767 = vmatpush1.msra.mxu0 0.0
  %768 = vmatprep.subr.mxu0 0.0
  %769 = vmatpush1.msra.mxu0 0.0
  %770 = vmatprep.subr.mxu0 0.0
  %771 = vmatpush1.msra.mxu0 0.0
  %772 = vmatprep.subr.mxu0 0.0
  %773 = vmatpush1.msra.mxu0 0.0
  %774 = vmatprep.subr.mxu0 0.0
  %775 = vmatpush1.msra.mxu0 0.0
  %776 = vmatprep.subr.mxu0 0.0
  %777 = vmatpush1.msra.mxu0 0.0
  %778 = vmatprep.subr.mxu0 0.0
  %779 = vmatpush1.msra.mxu0 0.0
  %780 = vmatprep.subr.mxu0 0.0
  %781 = vmatpush1.msra.mxu0 0.0
  %782 = vmatprep.subr.mxu0 0.0
  %783 = vmatpush1.msra.mxu0 0.0
  %784 = vmatprep.subr.mxu0 0.0
  %785 = vmatpush1.msra.mxu0 0.0
  %786 = vmatprep.subr.mxu0 0.0
  %787 = vmatpush1.msra.mxu0 0.0
  %788 = vmatprep.subr.mxu0 0.0
  %789 = vmatpush1.msra.mxu0 0.0
  %790 = vmatprep.subr.mxu0 0.0
  %791 = vmatpush1.msra.mxu0 0.0
  %792 = vmatprep.subr.mxu0 0.0
  %793 = vmatpush1.msra.mxu0 0.0
  %794 = vmatprep.subr.mxu0 0.0
  %795 = vmatpush1.msra.mxu0 0.0
  %796 = vmatprep.subr.mxu0 0.0
  %797 = vmatpush1.msra.mxu0 0.0
  %798 = vmatprep.subr.mxu0 0.0
  %799 = vmatpush1.msra.mxu0 0.0
  %800 = vmatprep.subr.mxu0 0.0
  %801 = vmatpush1.msra.mxu0 0.0
  %802 = vmatprep.subr.mxu0 0.0
  %803 = vmatpush1.msra.mxu0 0.0
  %804 = vmatprep.subr.mxu0 0.0
  %805 = vmatpush1.msra.mxu0 0.0
  %806 = vmatprep.subr.mxu0 0.0
  %807 = vmatpush1.msra.mxu0 0.0
  %808 = vmatprep.subr.mxu0 0.0
  %809 = vmatpush1.msra.mxu0 0.0
  %810 = vmatprep.subr.mxu0 0.0
  %811 = vmatpush1.msra.mxu0 0.0
  %812 = vmatprep.mubr.f32.mxu0 0.0
  %813 = vmatmul.mubr.f32.gmra.mrb[0].mxu0 %v746
  %v814 = vpop.f32.mrb[0].mxu0
  %v815 = vadd.f32 0.0, %v814
  %v816 = vpop.f32.mrb[0].mxu0
  %817 = vdwg.mxu0
  %v818 = vld [vmem:[%s3 + $0x8] sm:$0xff]
  %819 = vrot.lane.b32.xlu0 %v145, 112
  %v820 = vpop.permute.xlu0 %819
  %821 = vrot.lane.b32.xlu0 %v145, 80
  %v822 = vpop.permute.xlu0 %821
  %824 = vrot.lane.b32.xlu0 %v818, 112
  %v825 = vpop.permute.xlu0 %824
  %v827 = vsel %vm157, %v820, 0
  %v829 = vsel %vm157, %v822, 0
  %831 = vmatprep.subr.mxu0 0.0
  %832 = vmatpush1.xpose.msra.mxu0 %v829
  %833 = vmatprep.subr.mxu0 0.0
  %834 = vmatpush1.xpose.msra.mxu0 0.0
  %835 = vmatprep.subr.mxu0 0.0
  %836 = vmatpush1.xpose.msra.mxu0 0.0
  %837 = vmatprep.subr.mxu0 0.0
  %838 = vmatpush1.xpose.msra.mxu0 0.0
  %839 = vmatprep.subr.mxu0 0.0
  %840 = vmatpush1.xpose.msra.mxu0 0.0
  %841 = vmatprep.subr.mxu0 0.0
  %842 = vmatpush1.xpose.msra.mxu0 0.0
  %843 = vmatprep.subr.mxu0 0.0
  %844 = vmatpush1.xpose.msra.mxu0 0.0
  %845 = vmatprep.subr.mxu0 0.0
  %846 = vmatpush1.xpose.msra.mxu0 0.0
  %847 = vmatprep.subr.mxu0 0.0
  %848 = vmatpush1.xpose.msra.mxu0 0.0
  %849 = vmatprep.subr.mxu0 0.0
  %850 = vmatpush1.xpose.msra.mxu0 0.0
  %851 = vmatprep.subr.mxu0 0.0
  %852 = vmatpush1.xpose.msra.mxu0 0.0
  %853 = vmatprep.subr.mxu0 0.0
  %854 = vmatpush1.xpose.msra.mxu0 0.0
  %855 = vmatprep.subr.mxu0 0.0
  %856 = vmatpush1.xpose.msra.mxu0 0.0
  %857 = vmatprep.subr.mxu0 0.0
  %858 = vmatpush1.xpose.msra.mxu0 0.0
  %859 = vmatprep.subr.mxu0 0.0
  %860 = vmatpush1.xpose.msra.mxu0 0.0
  %861 = vmatprep.subr.mxu0 0.0
  %862 = vmatpush1.xpose.msra.mxu0 0.0
  %863 = vmatprep.subr.mxu0 0.0
  %864 = vmatpush1.xpose.msra.mxu0 0.0
  %865 = vmatprep.subr.mxu0 0.0
  %866 = vmatpush1.xpose.msra.mxu0 0.0
  %867 = vmatprep.subr.mxu0 0.0
  %868 = vmatpush1.xpose.msra.mxu0 0.0
  %869 = vmatprep.subr.mxu0 0.0
  %870 = vmatpush1.xpose.msra.mxu0 0.0
  %871 = vmatprep.subr.mxu0 0.0
  %872 = vmatpush1.xpose.msra.mxu0 0.0
  %873 = vmatprep.subr.mxu0 0.0
  %874 = vmatpush1.xpose.msra.mxu0 0.0
  %875 = vmatprep.subr.mxu0 0.0
  %876 = vmatpush1.xpose.msra.mxu0 0.0
  %877 = vmatprep.subr.mxu0 0.0
  %878 = vmatpush1.xpose.msra.mxu0 0.0
  %879 = vmatprep.subr.mxu0 0.0
  %880 = vmatpush1.xpose.msra.mxu0 0.0
  %881 = vmatprep.subr.mxu0 0.0
  %882 = vmatpush1.xpose.msra.mxu0 0.0
  %883 = vmatprep.subr.mxu0 0.0
  %884 = vmatpush1.xpose.msra.mxu0 0.0
  %885 = vmatprep.subr.mxu0 0.0
  %886 = vmatpush1.xpose.msra.mxu0 0.0
  %887 = vmatprep.subr.mxu0 0.0
  %888 = vmatpush1.xpose.msra.mxu0 0.0
  %889 = vmatprep.subr.mxu0 0.0
  %890 = vmatpush1.xpose.msra.mxu0 0.0
  %891 = vmatprep.subr.mxu0 0.0
  %892 = vmatpush1.xpose.msra.mxu0 0.0
  %893 = vmatprep.subr.mxu0 0.0
  %894 = vmatpush1.xpose.msra.mxu0 0.0
  %895 = vmatprep.mubr.f32.mxu0 0.0
  %896 = vmatmul.mubr.f32.gmra.mrb[0].mxu0 %v827
  %v897 = vpop.f32.mrb[0].mxu0
  %v898 = vadd.f32 %v825, %v897
  %v899 = vpop.f32.mrb[0].mxu0
  %900 = vdwg.mxu0
  %901 = vrot.lane.b32.xlu0 %v150, 112
  %v902 = vpop.permute.xlu0 %901
  %903 = vrot.lane.b32.xlu0 %v150, 80
  %v904 = vpop.permute.xlu0 %903
  %v905 = vsel %vm157, %v902, 0
  %v907 = vsel %vm157, %v904, 0
  %909 = vmatprep.subr.mxu0 0.0
  %910 = vmatpush1.xpose.msra.mxu0 %v907
  %911 = vmatprep.subr.mxu0 0.0
  %912 = vmatpush1.xpose.msra.mxu0 0.0
  %913 = vmatprep.subr.mxu0 0.0
  %914 = vmatpush1.xpose.msra.mxu0 0.0
  %915 = vmatprep.subr.mxu0 0.0
  %916 = vmatpush1.xpose.msra.mxu0 0.0
  %917 = vmatprep.subr.mxu0 0.0
  %918 = vmatpush1.xpose.msra.mxu0 0.0
  %919 = vmatprep.subr.mxu0 0.0
  %920 = vmatpush1.xpose.msra.mxu0 0.0
  %921 = vmatprep.subr.mxu0 0.0
  %922 = vmatpush1.xpose.msra.mxu0 0.0
  %923 = vmatprep.subr.mxu0 0.0
  %924 = vmatpush1.xpose.msra.mxu0 0.0
  %925 = vmatprep.subr.mxu0 0.0
  %926 = vmatpush1.xpose.msra.mxu0 0.0
  %927 = vmatprep.subr.mxu0 0.0
  %928 = vmatpush1.xpose.msra.mxu0 0.0
  %929 = vmatprep.subr.mxu0 0.0
  %930 = vmatpush1.xpose.msra.mxu0 0.0
  %931 = vmatprep.subr.mxu0 0.0
  %932 = vmatpush1.xpose.msra.mxu0 0.0
  %933 = vmatprep.subr.mxu0 0.0
  %934 = vmatpush1.xpose.msra.mxu0 0.0
  %935 = vmatprep.subr.mxu0 0.0
  %936 = vmatpush1.xpose.msra.mxu0 0.0
  %937 = vmatprep.subr.mxu0 0.0
  %938 = vmatpush1.xpose.msra.mxu0 0.0
  %939 = vmatprep.subr.mxu0 0.0
  %940 = vmatpush1.xpose.msra.mxu0 0.0
  %941 = vmatprep.subr.mxu0 0.0
  %942 = vmatpush1.xpose.msra.mxu0 0.0
  %943 = vmatprep.subr.mxu0 0.0
  %944 = vmatpush1.xpose.msra.mxu0 0.0
  %945 = vmatprep.subr.mxu0 0.0
  %946 = vmatpush1.xpose.msra.mxu0 0.0
  %947 = vmatprep.subr.mxu0 0.0
  %948 = vmatpush1.xpose.msra.mxu0 0.0
  %949 = vmatprep.subr.mxu0 0.0
  %950 = vmatpush1.xpose.msra.mxu0 0.0
  %951 = vmatprep.subr.mxu0 0.0
  %952 = vmatpush1.xpose.msra.mxu0 0.0
  %953 = vmatprep.subr.mxu0 0.0
  %954 = vmatpush1.xpose.msra.mxu0 0.0
  %955 = vmatprep.subr.mxu0 0.0
  %956 = vmatpush1.xpose.msra.mxu0 0.0
  %957 = vmatprep.subr.mxu0 0.0
  %958 = vmatpush1.xpose.msra.mxu0 0.0
  %959 = vmatprep.subr.mxu0 0.0
  %960 = vmatpush1.xpose.msra.mxu0 0.0
  %961 = vmatprep.subr.mxu0 0.0
  %962 = vmatpush1.xpose.msra.mxu0 0.0
  %963 = vmatprep.subr.mxu0 0.0
  %964 = vmatpush1.xpose.msra.mxu0 0.0
  %965 = vmatprep.subr.mxu0 0.0
  %966 = vmatpush1.xpose.msra.mxu0 0.0
  %967 = vmatprep.subr.mxu0 0.0
  %968 = vmatpush1.xpose.msra.mxu0 0.0
  %969 = vmatprep.subr.mxu0 0.0
  %970 = vmatpush1.xpose.msra.mxu0 0.0
  %971 = vmatprep.subr.mxu0 0.0
  %972 = vmatpush1.xpose.msra.mxu0 0.0
  %973 = vmatprep.mubr.f32.mxu0 0.0
  %974 = vmatmul.mubr.f32.gmra.mrb[0].mxu0 %v905
  %v975 = vpop.f32.mrb[0].mxu0
  %v976 = vadd.f32 %v825, %v975
  %v977 = vpop.f32.mrb[0].mxu0
  %978 = vdwg.mxu0
  %v979 = vsel %vm157, %v898, -inf
  %980 = vmax.xlane.f32.xlu0 %v979
  %v981 = vpop.xlane.xlu0 %980
  %v982 = vsel %vm157, %v976, -inf
  %983 = vmax.xlane.f32.xlu0 %v982
  %v984 = vpop.xlane.xlu0 %983
  %v985 = vsub.f32 %v898, %v981
  %v986 = vsub.f32 %v976, %v984
  %v987 = vmul.f32 %v985, 1.442695
  %v988 = vpow.pop %v987
  %v989 = vmul.f32 %v986, 1.442695
  %v990 = vpow.pop %v989
  %v991 = vsel %vm157, %v988, 0.0
  %992 = vadd.xlane.f32.xlu0 %v991
  %v993 = vpop.xlane.xlu0 %992
  %v994 = vsel %vm157, %v990, 0.0
  %995 = vadd.xlane.f32.xlu0 %v994
  %v996 = vpop.xlane.xlu0 %995
  %v997 = vrcp.pop %v993
  %v998 = vrcp.pop %v996
  %v999 = vmul.f32 %v988, %v997
  %v1000 = vmul.f32 %v990, %v998
  %1001 = vrot.lane.b32.xlu0 %v145, 48
  %v1002 = vpop.permute.xlu0 %1001
  %v1005 = vsel %vm157, %v999, 0
  %1007 = vmatprep.subr.mxu0 0.0
  %1008 = vmatpush1.msra.mxu0 %v1002
  %1009 = vmatprep.subr.mxu0 0.0
  %1010 = vmatpush1.msra.mxu0 0.0
  %1011 = vmatprep.subr.mxu0 0.0
  %1012 = vmatpush1.msra.mxu0 0.0
  %1013 = vmatprep.subr.mxu0 0.0
  %1014 = vmatpush1.msra.mxu0 0.0
  %1015 = vmatprep.subr.mxu0 0.0
  %1016 = vmatpush1.msra.mxu0 0.0
  %1017 = vmatprep.subr.mxu0 0.0
  %1018 = vmatpush1.msra.mxu0 0.0
  %1019 = vmatprep.subr.mxu0 0.0
  %1020 = vmatpush1.msra.mxu0 0.0
  %1021 = vmatprep.subr.mxu0 0.0
  %1022 = vmatpush1.msra.mxu0 0.0
  %1023 = vmatprep.subr.mxu0 0.0
  %1024 = vmatpush1.msra.mxu0 0.0
  %1025 = vmatprep.subr.mxu0 0.0
  %1026 = vmatpush1.msra.mxu0 0.0
  %1027 = vmatprep.subr.mxu0 0.0
  %1028 = vmatpush1.msra.mxu0 0.0
  %1029 = vmatprep.subr.mxu0 0.0
  %1030 = vmatpush1.msra.mxu0 0.0
  %1031 = vmatprep.subr.mxu0 0.0
  %1032 = vmatpush1.msra.mxu0 0.0
  %1033 = vmatprep.subr.mxu0 0.0
  %1034 = vmatpush1.msra.mxu0 0.0
  %1035 = vmatprep.subr.mxu0 0.0
  %1036 = vmatpush1.msra.mxu0 0.0
  %1037 = vmatprep.subr.mxu0 0.0
  %1038 = vmatpush1.msra.mxu0 0.0
  %1039 = vmatprep.subr.mxu0 0.0
  %1040 = vmatpush1.msra.mxu0 0.0
  %1041 = vmatprep.subr.mxu0 0.0
  %1042 = vmatpush1.msra.mxu0 0.0
  %1043 = vmatprep.subr.mxu0 0.0
  %1044 = vmatpush1.msra.mxu0 0.0
  %1045 = vmatprep.subr.mxu0 0.0
  %1046 = vmatpush1.msra.mxu0 0.0
  %1047 = vmatprep.subr.mxu0 0.0
  %1048 = vmatpush1.msra.mxu0 0.0
  %1049 = vmatprep.subr.mxu0 0.0
  %1050 = vmatpush1.msra.mxu0 0.0
  %1051 = vmatprep.subr.mxu0 0.0
  %1052 = vmatpush1.msra.mxu0 0.0
  %1053 = vmatprep.subr.mxu0 0.0
  %1054 = vmatpush1.msra.mxu0 0.0
  %1055 = vmatprep.subr.mxu0 0.0
  %1056 = vmatpush1.msra.mxu0 0.0
  %1057 = vmatprep.subr.mxu0 0.0
  %1058 = vmatpush1.msra.mxu0 0.0
  %1059 = vmatprep.subr.mxu0 0.0
  %1060 = vmatpush1.msra.mxu0 0.0
  %1061 = vmatprep.subr.mxu0 0.0
  %1062 = vmatpush1.msra.mxu0 0.0
  %1063 = vmatprep.subr.mxu0 0.0
  %1064 = vmatpush1.msra.mxu0 0.0
  %1065 = vmatprep.subr.mxu0 0.0
  %1066 = vmatpush1.msra.mxu0 0.0
  %1067 = vmatprep.subr.mxu0 0.0
  %1068 = vmatpush1.msra.mxu0 0.0
  %1069 = vmatprep.subr.mxu0 0.0
  %1070 = vmatpush1.msra.mxu0 0.0
  %1071 = vmatprep.mubr.f32.mxu0 0.0
  %1072 = vmatmul.mubr.f32.gmra.mrb[0].mxu0 %v1005
  %v1073 = vpop.f32.mrb[0].mxu0
  %v1074 = vadd.f32 0.0, %v1073
  %v1075 = vpop.f32.mrb[0].mxu0
  %1076 = vdwg.mxu0
  %1077 = vrot.lane.b32.xlu0 %v150, 48
  %v1078 = vpop.permute.xlu0 %1077
  %v1081 = vsel %vm157, %v1000, 0
  %1083 = vmatprep.subr.mxu0 0.0
  %1084 = vmatpush1.msra.mxu0 %v1078
  %1085 = vmatprep.subr.mxu0 0.0
  %1086 = vmatpush1.msra.mxu0 0.0
  %1087 = vmatprep.subr.mxu0 0.0
  %1088 = vmatpush1.msra.mxu0 0.0
  %1089 = vmatprep.subr.mxu0 0.0
  %1090 = vmatpush1.msra.mxu0 0.0
  %1091 = vmatprep.subr.mxu0 0.0
  %1092 = vmatpush1.msra.mxu0 0.0
  %1093 = vmatprep.subr.mxu0 0.0
  %1094 = vmatpush1.msra.mxu0 0.0
  %1095 = vmatprep.subr.mxu0 0.0
  %1096 = vmatpush1.msra.mxu0 0.0
  %1097 = vmatprep.subr.mxu0 0.0
  %1098 = vmatpush1.msra.mxu0 0.0
  %1099 = vmatprep.subr.mxu0 0.0
  %1100 = vmatpush1.msra.mxu0 0.0
  %1101 = vmatprep.subr.mxu0 0.0
  %1102 = vmatpush1.msra.mxu0 0.0
  %1103 = vmatprep.subr.mxu0 0.0
  %1104 = vmatpush1.msra.mxu0 0.0
  %1105 = vmatprep.subr.mxu0 0.0
  %1106 = vmatpush1.msra.mxu0 0.0
  %1107 = vmatprep.subr.mxu0 0.0
  %1108 = vmatpush1.msra.mxu0 0.0
  %1109 = vmatprep.subr.mxu0 0.0
  %1110 = vmatpush1.msra.mxu0 0.0
  %1111 = vmatprep.subr.mxu0 0.0
  %1112 = vmatpush1.msra.mxu0 0.0
  %1113 = vmatprep.subr.mxu0 0.0
  %1114 = vmatpush1.msra.mxu0 0.0
  %1115 = vmatprep.subr.mxu0 0.0
  %1116 = vmatpush1.msra.mxu0 0.0
  %1117 = vmatprep.subr.mxu0 0.0
  %1118 = vmatpush1.msra.mxu0 0.0
  %1119 = vmatprep.subr.mxu0 0.0
  %1120 = vmatpush1.msra.mxu0 0.0
  %1121 = vmatprep.subr.mxu0 0.0
  %1122 = vmatpush1.msra.mxu0 0.0
  %1123 = vmatprep.subr.mxu0 0.0
  %1124 = vmatpush1.msra.mxu0 0.0
  %1125 = vmatprep.subr.mxu0 0.0
  %1126 = vmatpush1.msra.mxu0 0.0
  %1127 = vmatprep.subr.mxu0 0.0
  %1128 = vmatpush1.msra.mxu0 0.0
  %1129 = vmatprep.subr.mxu0 0.0
  %1130 = vmatpush1.msra.mxu0 0.0
  %1131 = vmatprep.subr.mxu0 0.0
  %1132 = vmatpush1.msra.mxu0 0.0
  %1133 = vmatprep.subr.mxu0 0.0
  %1134 = vmatpush1.msra.mxu0 0.0
  %1135 = vmatprep.subr.mxu0 0.0
  %1136 = vmatpush1.msra.mxu0 0.0
  %1137 = vmatprep.subr.mxu0 0.0
  %1138 = vmatpush1.msra.mxu0 0.0
  %1139 = vmatprep.subr.mxu0 0.0
  %1140 = vmatpush1.msra.mxu0 0.0
  %1141 = vmatprep.subr.mxu0 0.0
  %1142 = vmatpush1.msra.mxu0 0.0
  %1143 = vmatprep.subr.mxu0 0.0
  %1144 = vmatpush1.msra.mxu0 0.0
  %1145 = vmatprep.subr.mxu0 0.0
  %1146 = vmatpush1.msra.mxu0 0.0
  %1147 = vmatprep.mubr.f32.mxu0 0.0
  %1148 = vmatmul.mubr.f32.gmra.mrb[0].mxu0 %v1081
  %v1149 = vpop.f32.mrb[0].mxu0
  %v1150 = vadd.f32 0.0, %v1149
  %v1151 = vpop.f32.mrb[0].mxu0
  %1152 = vdwg.mxu0
  %v1153 = vld [vmem:[%s3 + $0x8] sm:$0xff]
  %1154 = vrot.lane.b32.xlu0 %v145, 104
  %v1155 = vpop.permute.xlu0 %1154
  %1156 = vrot.lane.b32.xlu0 %v145, 72
  %v1157 = vpop.permute.xlu0 %1156
  %1159 = vrot.lane.b32.xlu0 %v1153, 104
  %v1160 = vpop.permute.xlu0 %1159
  %v1162 = vsel %vm157, %v1155, 0
  %v1164 = vsel %vm157, %v1157, 0
  %1166 = vmatprep.subr.mxu0 0.0
  %1167 = vmatpush1.xpose.msra.mxu0 %v1164
  %1168 = vmatprep.subr.mxu0 0.0
  %1169 = vmatpush1.xpose.msra.mxu0 0.0
  %1170 = vmatprep.subr.mxu0 0.0
  %1171 = vmatpush1.xpose.msra.mxu0 0.0
  %1172 = vmatprep.subr.mxu0 0.0
  %1173 = vmatpush1.xpose.msra.mxu0 0.0
  %1174 = vmatprep.subr.mxu0 0.0
  %1175 = vmatpush1.xpose.msra.mxu0 0.0
  %1176 = vmatprep.subr.mxu0 0.0
  %1177 = vmatpush1.xpose.msra.mxu0 0.0
  %1178 = vmatprep.subr.mxu0 0.0
  %1179 = vmatpush1.xpose.msra.mxu0 0.0
  %1180 = vmatprep.subr.mxu0 0.0
  %1181 = vmatpush1.xpose.msra.mxu0 0.0
  %1182 = vmatprep.subr.mxu0 0.0
  %1183 = vmatpush1.xpose.msra.mxu0 0.0
  %1184 = vmatprep.subr.mxu0 0.0
  %1185 = vmatpush1.xpose.msra.mxu0 0.0
  %1186 = vmatprep.subr.mxu0 0.0
  %1187 = vmatpush1.xpose.msra.mxu0 0.0
  %1188 = vmatprep.subr.mxu0 0.0
  %1189 = vmatpush1.xpose.msra.mxu0 0.0
  %1190 = vmatprep.subr.mxu0 0.0
  %1191 = vmatpush1.xpose.msra.mxu0 0.0
  %1192 = vmatprep.subr.mxu0 0.0
  %1193 = vmatpush1.xpose.msra.mxu0 0.0
  %1194 = vmatprep.subr.mxu0 0.0
  %1195 = vmatpush1.xpose.msra.mxu0 0.0
  %1196 = vmatprep.subr.mxu0 0.0
  %1197 = vmatpush1.xpose.msra.mxu0 0.0
  %1198 = vmatprep.subr.mxu0 0.0
  %1199 = vmatpush1.xpose.msra.mxu0 0.0
  %1200 = vmatprep.subr.mxu0 0.0
  %1201 = vmatpush1.xpose.msra.mxu0 0.0
  %1202 = vmatprep.subr.mxu0 0.0
  %1203 = vmatpush1.xpose.msra.mxu0 0.0
  %1204 = vmatprep.subr.mxu0 0.0
  %1205 = vmatpush1.xpose.msra.mxu0 0.0
  %1206 = vmatprep.subr.mxu0 0.0
  %1207 = vmatpush1.xpose.msra.mxu0 0.0
  %1208 = vmatprep.subr.mxu0 0.0
  %1209 = vmatpush1.xpose.msra.mxu0 0.0
  %1210 = vmatprep.subr.mxu0 0.0
  %1211 = vmatpush1.xpose.msra.mxu0 0.0
  %1212 = vmatprep.subr.mxu0 0.0
  %1213 = vmatpush1.xpose.msra.mxu0 0.0
  %1214 = vmatprep.subr.mxu0 0.0
  %1215 = vmatpush1.xpose.msra.mxu0 0.0
  %1216 = vmatprep.subr.mxu0 0.0
  %1217 = vmatpush1.xpose.msra.mxu0 0.0
  %1218 = vmatprep.subr.mxu0 0.0
  %1219 = vmatpush1.xpose.msra.mxu0 0.0
  %1220 = vmatprep.subr.mxu0 0.0
  %1221 = vmatpush1.xpose.msra.mxu0 0.0
  %1222 = vmatprep.subr.mxu0 0.0
  %1223 = vmatpush1.xpose.msra.mxu0 0.0
  %1224 = vmatprep.subr.mxu0 0.0
  %1225 = vmatpush1.xpose.msra.mxu0 0.0
  %1226 = vmatprep.subr.mxu0 0.0
  %1227 = vmatpush1.xpose.msra.mxu0 0.0
  %1228 = vmatprep.subr.mxu0 0.0
  %1229 = vmatpush1.xpose.msra.mxu0 0.0
  %1230 = vmatprep.mubr.f32.mxu0 0.0
  %1231 = vmatmul.mubr.f32.gmra.mrb[0].mxu0 %v1162
  %v1232 = vpop.f32.mrb[0].mxu0
  %v1233 = vadd.f32 %v1160, %v1232
  %v1234 = vpop.f32.mrb[0].mxu0
  %1235 = vdwg.mxu0
  %1236 = vrot.lane.b32.xlu0 %v150, 104
  %v1237 = vpop.permute.xlu0 %1236
  %1238 = vrot.lane.b32.xlu0 %v150, 72
  %v1239 = vpop.permute.xlu0 %1238
  %v1240 = vsel %vm157, %v1237, 0
  %v1242 = vsel %vm157, %v1239, 0
  %1244 = vmatprep.subr.mxu0 0.0
  %1245 = vmatpush1.xpose.msra.mxu0 %v1242
  %1246 = vmatprep.subr.mxu0 0.0
  %1247 = vmatpush1.xpose.msra.mxu0 0.0
  %1248 = vmatprep.subr.mxu0 0.0
  %1249 = vmatpush1.xpose.msra.mxu0 0.0
  %1250 = vmatprep.subr.mxu0 0.0
  %1251 = vmatpush1.xpose.msra.mxu0 0.0
  %1252 = vmatprep.subr.mxu0 0.0
  %1253 = vmatpush1.xpose.msra.mxu0 0.0
  %1254 = vmatprep.subr.mxu0 0.0
  %1255 = vmatpush1.xpose.msra.mxu0 0.0
  %1256 = vmatprep.subr.mxu0 0.0
  %1257 = vmatpush1.xpose.msra.mxu0 0.0
  %1258 = vmatprep.subr.mxu0 0.0
  %1259 = vmatpush1.xpose.msra.mxu0 0.0
  %1260 = vmatprep.subr.mxu0 0.0
  %1261 = vmatpush1.xpose.msra.mxu0 0.0
  %1262 = vmatprep.subr.mxu0 0.0
  %1263 = vmatpush1.xpose.msra.mxu0 0.0
  %1264 = vmatprep.subr.mxu0 0.0
  %1265 = vmatpush1.xpose.msra.mxu0 0.0
  %1266 = vmatprep.subr.mxu0 0.0
  %1267 = vmatpush1.xpose.msra.mxu0 0.0
  %1268 = vmatprep.subr.mxu0 0.0
  %1269 = vmatpush1.xpose.msra.mxu0 0.0
  %1270 = vmatprep.subr.mxu0 0.0
  %1271 = vmatpush1.xpose.msra.mxu0 0.0
  %1272 = vmatprep.subr.mxu0 0.0
  %1273 = vmatpush1.xpose.msra.mxu0 0.0
  %1274 = vmatprep.subr.mxu0 0.0
  %1275 = vmatpush1.xpose.msra.mxu0 0.0
  %1276 = vmatprep.subr.mxu0 0.0
  %1277 = vmatpush1.xpose.msra.mxu0 0.0
  %1278 = vmatprep.subr.mxu0 0.0
  %1279 = vmatpush1.xpose.msra.mxu0 0.0
  %1280 = vmatprep.subr.mxu0 0.0
  %1281 = vmatpush1.xpose.msra.mxu0 0.0
  %1282 = vmatprep.subr.mxu0 0.0
  %1283 = vmatpush1.xpose.msra.mxu0 0.0
  %1284 = vmatprep.subr.mxu0 0.0
  %1285 = vmatpush1.xpose.msra.mxu0 0.0
  %1286 = vmatprep.subr.mxu0 0.0
  %1287 = vmatpush1.xpose.msra.mxu0 0.0
  %1288 = vmatprep.subr.mxu0 0.0
  %1289 = vmatpush1.xpose.msra.mxu0 0.0
  %1290 = vmatprep.subr.mxu0 0.0
  %1291 = vmatpush1.xpose.msra.mxu0 0.0
  %1292 = vmatprep.subr.mxu0 0.0
  %1293 = vmatpush1.xpose.msra.mxu0 0.0
  %1294 = vmatprep.subr.mxu0 0.0
  %1295 = vmatpush1.xpose.msra.mxu0 0.0
  %1296 = vmatprep.subr.mxu0 0.0
  %1297 = vmatpush1.xpose.msra.mxu0 0.0
  %1298 = vmatprep.subr.mxu0 0.0
  %1299 = vmatpush1.xpose.msra.mxu0 0.0
  %1300 = vmatprep.subr.mxu0 0.0
  %1301 = vmatpush1.xpose.msra.mxu0 0.0
  %1302 = vmatprep.subr.mxu0 0.0
  %1303 = vmatpush1.xpose.msra.mxu0 0.0
  %1304 = vmatprep.subr.mxu0 0.0
  %1305 = vmatpush1.xpose.msra.mxu0 0.0
  %1306 = vmatprep.subr.mxu0 0.0
  %1307 = vmatpush1.xpose.msra.mxu0 0.0
  %1308 = vmatprep.mubr.f32.mxu0 0.0
  %1309 = vmatmul.mubr.f32.gmra.mrb[0].mxu0 %v1240
  %v1310 = vpop.f32.mrb[0].mxu0
  %v1311 = vadd.f32 %v1160, %v1310
  %v1312 = vpop.f32.mrb[0].mxu0
  %1313 = vdwg.mxu0
  %v1314 = vsel %vm157, %v1233, -inf
  %1315 = vmax.xlane.f32.xlu0 %v1314
  %v1316 = vpop.xlane.xlu0 %1315
  %v1317 = vsel %vm157, %v1311, -inf
  %1318 = vmax.xlane.f32.xlu0 %v1317
  %v1319 = vpop.xlane.xlu0 %1318
  %v1320 = vsub.f32 %v1233, %v1316
  %v1321 = vsub.f32 %v1311, %v1319
  %v1322 = vmul.f32 %v1320, 1.442695
  %v1323 = vpow.pop %v1322
  %v1324 = vmul.f32 %v1321, 1.442695
  %v1325 = vpow.pop %v1324
  %v1326 = vsel %vm157, %v1323, 0.0
  %1327 = vadd.xlane.f32.xlu0 %v1326
  %v1328 = vpop.xlane.xlu0 %1327
  %v1329 = vsel %vm157, %v1325, 0.0
  %1330 = vadd.xlane.f32.xlu0 %v1329
  %v1331 = vpop.xlane.xlu0 %1330
  %v1332 = vrcp.pop %v1328
  %v1333 = vrcp.pop %v1331
  %v1334 = vmul.f32 %v1323, %v1332
  %v1335 = vmul.f32 %v1325, %v1333
  %1336 = vrot.lane.b32.xlu0 %v145, 40
  %v1337 = vpop.permute.xlu0 %1336
  %v1340 = vsel %vm157, %v1334, 0
  %1342 = vmatprep.subr.mxu0 0.0
  %1343 = vmatpush1.msra.mxu0 %v1337
  %1344 = vmatprep.subr.mxu0 0.0
  %1345 = vmatpush1.msra.mxu0 0.0
  %1346 = vmatprep.subr.mxu0 0.0
  %1347 = vmatpush1.msra.mxu0 0.0
  %1348 = vmatprep.subr.mxu0 0.0
  %1349 = vmatpush1.msra.mxu0 0.0
  %1350 = vmatprep.subr.mxu0 0.0
  %1351 = vmatpush1.msra.mxu0 0.0
  %1352 = vmatprep.subr.mxu0 0.0
  %1353 = vmatpush1.msra.mxu0 0.0
  %1354 = vmatprep.subr.mxu0 0.0
  %1355 = vmatpush1.msra.mxu0 0.0
  %1356 = vmatprep.subr.mxu0 0.0
  %1357 = vmatpush1.msra.mxu0 0.0
  %1358 = vmatprep.subr.mxu0 0.0
  %1359 = vmatpush1.msra.mxu0 0.0
  %1360 = vmatprep.subr.mxu0 0.0
  %1361 = vmatpush1.msra.mxu0 0.0
  %1362 = vmatprep.subr.mxu0 0.0
  %1363 = vmatpush1.msra.mxu0 0.0
  %1364 = vmatprep.subr.mxu0 0.0
  %1365 = vmatpush1.msra.mxu0 0.0
  %1366 = vmatprep.subr.mxu0 0.0
  %1367 = vmatpush1.msra.mxu0 0.0
  %1368 = vmatprep.subr.mxu0 0.0
  %1369 = vmatpush1.msra.mxu0 0.0
  %1370 = vmatprep.subr.mxu0 0.0
  %1371 = vmatpush1.msra.mxu0 0.0
  %1372 = vmatprep.subr.mxu0 0.0
  %1373 = vmatpush1.msra.mxu0 0.0
  %1374 = vmatprep.subr.mxu0 0.0
  %1375 = vmatpush1.msra.mxu0 0.0
  %1376 = vmatprep.subr.mxu0 0.0
  %1377 = vmatpush1.msra.mxu0 0.0
  %1378 = vmatprep.subr.mxu0 0.0
  %1379 = vmatpush1.msra.mxu0 0.0
  %1380 = vmatprep.subr.mxu0 0.0
  %1381 = vmatpush1.msra.mxu0 0.0
  %1382 = vmatprep.subr.mxu0 0.0
  %1383 = vmatpush1.msra.mxu0 0.0
  %1384 = vmatprep.subr.mxu0 0.0
  %1385 = vmatpush1.msra.mxu0 0.0
  %1386 = vmatprep.subr.mxu0 0.0
  %1387 = vmatpush1.msra.mxu0 0.0
  %1388 = vmatprep.subr.mxu0 0.0
  %1389 = vmatpush1.msra.mxu0 0.0
  %1390 = vmatprep.subr.mxu0 0.0
  %1391 = vmatpush1.msra.mxu0 0.0
  %1392 = vmatprep.subr.mxu0 0.0
  %1393 = vmatpush1.msra.mxu0 0.0
  %1394 = vmatprep.subr.mxu0 0.0
  %1395 = vmatpush1.msra.mxu0 0.0
  %1396 = vmatprep.subr.mxu0 0.0
  %1397 = vmatpush1.msra.mxu0 0.0
  %1398 = vmatprep.subr.mxu0 0.0
  %1399 = vmatpush1.msra.mxu0 0.0
  %1400 = vmatprep.subr.mxu0 0.0
  %1401 = vmatpush1.msra.mxu0 0.0
  %1402 = vmatprep.subr.mxu0 0.0
  %1403 = vmatpush1.msra.mxu0 0.0
  %1404 = vmatprep.subr.mxu0 0.0
  %1405 = vmatpush1.msra.mxu0 0.0
  %1406 = vmatprep.mubr.f32.mxu0 0.0
  %1407 = vmatmul.mubr.f32.gmra.mrb[0].mxu0 %v1340
  %v1408 = vpop.f32.mrb[0].mxu0
  %v1409 = vadd.f32 0.0, %v1408
  %v1410 = vpop.f32.mrb[0].mxu0
  %1411 = vdwg.mxu0
  %1412 = vrot.lane.b32.xlu0 %v150, 40
  %v1413 = vpop.permute.xlu0 %1412
  %v1416 = vsel %vm157, %v1335, 0
  %1418 = vmatprep.subr.mxu0 0.0
  %1419 = vmatpush1.msra.mxu0 %v1413
  %1420 = vmatprep.subr.mxu0 0.0
  %1421 = vmatpush1.msra.mxu0 0.0
  %1422 = vmatprep.subr.mxu0 0.0
  %1423 = vmatpush1.msra.mxu0 0.0
  %1424 = vmatprep.subr.mxu0 0.0
  %1425 = vmatpush1.msra.mxu0 0.0
  %1426 = vmatprep.subr.mxu0 0.0
  %1427 = vmatpush1.msra.mxu0 0.0
  %1428 = vmatprep.subr.mxu0 0.0
  %1429 = vmatpush1.msra.mxu0 0.0
  %1430 = vmatprep.subr.mxu0 0.0
  %1431 = vmatpush1.msra.mxu0 0.0
  %1432 = vmatprep.subr.mxu0 0.0
  %1433 = vmatpush1.msra.mxu0 0.0
  %1434 = vmatprep.subr.mxu0 0.0
  %1435 = vmatpush1.msra.mxu0 0.0
  %1436 = vmatprep.subr.mxu0 0.0
  %1437 = vmatpush1.msra.mxu0 0.0
  %1438 = vmatprep.subr.mxu0 0.0
  %1439 = vmatpush1.msra.mxu0 0.0
  %1440 = vmatprep.subr.mxu0 0.0
  %1441 = vmatpush1.msra.mxu0 0.0
  %1442 = vmatprep.subr.mxu0 0.0
  %1443 = vmatpush1.msra.mxu0 0.0
  %1444 = vmatprep.subr.mxu0 0.0
  %1445 = vmatpush1.msra.mxu0 0.0
  %1446 = vmatprep.subr.mxu0 0.0
  %1447 = vmatpush1.msra.mxu0 0.0
  %1448 = vmatprep.subr.mxu0 0.0
  %1449 = vmatpush1.msra.mxu0 0.0
  %1450 = vmatprep.subr.mxu0 0.0
  %1451 = vmatpush1.msra.mxu0 0.0
  %1452 = vmatprep.subr.mxu0 0.0
  %1453 = vmatpush1.msra.mxu0 0.0
  %1454 = vmatprep.subr.mxu0 0.0
  %1455 = vmatpush1.msra.mxu0 0.0
  %1456 = vmatprep.subr.mxu0 0.0
  %1457 = vmatpush1.msra.mxu0 0.0
  %1458 = vmatprep.subr.mxu0 0.0
  %1459 = vmatpush1.msra.mxu0 0.0
  %1460 = vmatprep.subr.mxu0 0.0
  %1461 = vmatpush1.msra.mxu0 0.0
  %1462 = vmatprep.subr.mxu0 0.0
  %1463 = vmatpush1.msra.mxu0 0.0
  %1464 = vmatprep.subr.mxu0 0.0
  %1465 = vmatpush1.msra.mxu0 0.0
  %1466 = vmatprep.subr.mxu0 0.0
  %1467 = vmatpush1.msra.mxu0 0.0
  %1468 = vmatprep.subr.mxu0 0.0
  %1469 = vmatpush1.msra.mxu0 0.0
  %1470 = vmatprep.subr.mxu0 0.0
  %1471 = vmatpush1.msra.mxu0 0.0
  %1472 = vmatprep.subr.mxu0 0.0
  %1473 = vmatpush1.msra.mxu0 0.0
  %1474 = vmatprep.subr.mxu0 0.0
  %1475 = vmatpush1.msra.mxu0 0.0
  %1476 = vmatprep.subr.mxu0 0.0
  %1477 = vmatpush1.msra.mxu0 0.0
  %1478 = vmatprep.subr.mxu0 0.0
  %1479 = vmatpush1.msra.mxu0 0.0
  %1480 = vmatprep.subr.mxu0 0.0
  %1481 = vmatpush1.msra.mxu0 0.0
  %1482 = vmatprep.mubr.f32.mxu0 0.0
  %1483 = vmatmul.mubr.f32.gmra.mrb[0].mxu0 %v1416
  %v1484 = vpop.f32.mrb[0].mxu0
  %v1485 = vadd.f32 0.0, %v1484
  %v1486 = vpop.f32.mrb[0].mxu0
  %1487 = vdwg.mxu0
  %1490 = vrot.lane.b32.xlu0 %v739, 8
  %v1491 = vpop.permute.xlu0 %1490
  %1492 = vrot.lane.b32.xlu0 %v815, 8
  %v1493 = vpop.permute.xlu0 %1492
  %1498 = vrot.lane.b32.xlu0 %v1074, 16
  %v1499 = vpop.permute.xlu0 %1498
  %1500 = vrot.lane.b32.xlu0 %v1150, 16
  %v1501 = vpop.permute.xlu0 %1500
  %1506 = vrot.lane.b32.xlu0 %v1409, 24
  %v1507 = vpop.permute.xlu0 %1506
  %1508 = vrot.lane.b32.xlu0 %v1485, 24
  %v1509 = vpop.permute.xlu0 %1508
  %v1512 = vsel %vm157, %v404, %v1491
  %v1513 = vsel %vm157, %v480, %v1493
  %vm1514 = vcmask 130048
  %v1515 = vsel %vm1514, %v1512, %v1499
  %v1516 = vsel %vm1514, %v1513, %v1501
  %vm1517 = vcmask 195584
  %v1518 = vsel %vm1517, %v1515, %v1507
  %v1519 = vsel %vm1517, %v1516, %v1509
  %v1520 = vadd.f32 %v17, %v1518
  %v1521 = vadd.f32 %v18, %v1519
  %v1522 = vsel %vm23, %v1520, 0.0
  %1523 = vadd.xlane.f32.xlu0 %v1522
  %v1524 = vpop.xlane.xlu0 %1523
  %v1525 = vsel %vm23, %v1521, 0.0
  %1526 = vadd.xlane.f32.xlu0 %v1525
  %v1527 = vpop.xlane.xlu0 %1526
  %v1528 = vmul.f32 %v1524, %v30
  %v1529 = vmul.f32 %v1527, %v30
  %v1530 = vsub.f32 %v1520, %v1528
  %v1531 = vsub.f32 %v1521, %v1529
  %v1532 = vmul.f32 %v1530, %v1530
  %v1533 = vmul.f32 %v1531, %v1531
  %v1534 = vsel %vm23, %v1532, 0.0
  %1535 = vadd.xlane.f32.xlu0 %v1534
  %v1536 = vpop.xlane.xlu0 %1535
  %v1537 = vsel %vm23, %v1533, 0.0
  %1538 = vadd.xlane.f32.xlu0 %v1537
  %v1539 = vpop.xlane.xlu0 %1538
  %v1540 = vmul.f32 %v1536, %v30
  %v1541 = vmul.f32 %v1539, %v30
  %v1542 = vadd.f32 %v1540, 1e-05
  %v1543 = vadd.f32 %v1541, 1e-05
  %v1544 = vrsqrt.pop %v1542
  %v1545 = vrsqrt.pop %v1543
  %v1546 = vmul.f32 %v1530, %v1544
  %v1547 = vmul.f32 %v1531, %v1545
  %v1548 = vlaneseq
  %v1549 = vshrl.u32 %v1548, 7
  %v1550 = vsub.s32 0, %v1549
  %v1551 = vrot.slane %v21, %v1550
  %v1552 = vmul.f32 %v1546, %v1551
  %v1553 = vmul.f32 %v1547, %v1551
  %v1554 = vlaneseq
  %v1555 = vshrl.u32 %v1554, 7
  %v1556 = vsub.s32 0, %v1555
  %v1557 = vrot.slane %v22, %v1556
  %v1558 = vadd.f32 %v1552, %v1557
  %v1559 = vadd.f32 %v1553, %v1557
  %v1560 = vld [vmem:[%s1] sm:$0xff]
  %v1561 = vld [vmem:[%s1 + $0x8] sm:$0xff]
  %v1562 = vld [vmem:[%s1 + $0x10] sm:$0xff]
  %v1563 = vld [vmem:[%s1 + $0x18] sm:$0xff]
  %v1564 = vld [vmem:[%s1 + $0x20] sm:$0xff]
  %v1565 = vld [vmem:[%s1 + $0x28] sm:$0xff]
  %v1566 = vld [vmem:[%s1 + $0x30] sm:$0xff]
  %v1567 = vld [vmem:[%s1 + $0x38] sm:$0xff]
  %v1568 = vld [vmem:[%s3 + $0x1] sm:$0x1]
  %v1569 = vlaneseq
  %v1570 = vshrl.u32 %v1569, 7
  %v1571 = vsub.s32 0, %v1570
  %v1572 = vrot.slane %v1568, %v1571
  %1581 = vrot.lane.b32.xlu0 %v1560, 32
  %v1582 = vpop.permute.xlu0 %1581
  %1583 = vrot.lane.b32.xlu0 %v1561, 32
  %v1584 = vpop.permute.xlu0 %1583
  %1585 = vrot.lane.b32.xlu0 %v1562, 32
  %v1586 = vpop.permute.xlu0 %1585
  %1587 = vrot.lane.b32.xlu0 %v1563, 32
  %v1588 = vpop.permute.xlu0 %1587
  %1589 = vrot.lane.b32.xlu0 %v1564, 32
  %v1590 = vpop.permute.xlu0 %1589
  %1591 = vrot.lane.b32.xlu0 %v1565, 32
  %v1592 = vpop.permute.xlu0 %1591
  %1593 = vrot.lane.b32.xlu0 %v1566, 32
  %v1594 = vpop.permute.xlu0 %1593
  %1595 = vrot.lane.b32.xlu0 %v1567, 32
  %v1596 = vpop.permute.xlu0 %1595
  %v1597 = vsel %vm23, %v1582, %v1584
  %v1598 = vsel %vm23, %v1586, %v1588
  %v1599 = vsel %vm23, %v1590, %v1592
  %v1600 = vsel %vm23, %v1594, %v1596
  %v1606 = vsel %vm23, %v1558, 0
  %v1609 = vsel %vm23, %v1559, 0
  %1611 = vmatprep.subr.mxu0 0.0
  %1612 = vmatpush1.msra.mxu0 %v1597
  %1613 = vmatprep.subr.mxu0 0.0
  %1614 = vmatpush1.msra.mxu0 %v1598
  %1615 = vmatprep.subr.mxu0 0.0
  %1616 = vmatpush1.msra.mxu0 %v1599
  %1617 = vmatprep.subr.mxu0 0.0
  %1618 = vmatpush1.msra.mxu0 %v1600
  %1619 = vmatprep.subr.mxu0 0.0
  %1620 = vmatpush1.msra.mxu0 0.0
  %1621 = vmatprep.subr.mxu0 0.0
  %1622 = vmatpush1.msra.mxu0 0.0
  %1623 = vmatprep.subr.mxu0 0.0
  %1624 = vmatpush1.msra.mxu0 0.0
  %1625 = vmatprep.subr.mxu0 0.0
  %1626 = vmatpush1.msra.mxu0 0.0
  %1627 = vmatprep.subr.mxu0 0.0
  %1628 = vmatpush1.msra.mxu0 0.0
  %1629 = vmatprep.subr.mxu0 0.0
  %1630 = vmatpush1.msra.mxu0 0.0
  %1631 = vmatprep.subr.mxu0 0.0
  %1632 = vmatpush1.msra.mxu0 0.0
  %1633 = vmatprep.subr.mxu0 0.0
  %1634 = vmatpush1.msra.mxu0 0.0
  %1635 = vmatprep.subr.mxu0 0.0
  %1636 = vmatpush1.msra.mxu0 0.0
  %1637 = vmatprep.subr.mxu0 0.0
  %1638 = vmatpush1.msra.mxu0 0.0
  %1639 = vmatprep.subr.mxu0 0.0
  %1640 = vmatpush1.msra.mxu0 0.0
  %1641 = vmatprep.subr.mxu0 0.0
  %1642 = vmatpush1.msra.mxu0 0.0
  %1643 = vmatprep.subr.mxu0 0.0
  %1644 = vmatpush1.msra.mxu0 0.0
  %1645 = vmatprep.subr.mxu0 0.0
  %1646 = vmatpush1.msra.mxu0 0.0
  %1647 = vmatprep.subr.mxu0 0.0
  %1648 = vmatpush1.msra.mxu0 0.0
  %1649 = vmatprep.subr.mxu0 0.0
  %1650 = vmatpush1.msra.mxu0 0.0
  %1651 = vmatprep.subr.mxu0 0.0
  %1652 = vmatpush1.msra.mxu0 0.0
  %1653 = vmatprep.subr.mxu0 0.0
  %1654 = vmatpush1.msra.mxu0 0.0
  %1655 = vmatprep.subr.mxu0 0.0
  %1656 = vmatpush1.msra.mxu0 0.0
  %1657 = vmatprep.subr.mxu0 0.0
  %1658 = vmatpush1.msra.mxu0 0.0
  %1659 = vmatprep.subr.mxu0 0.0
  %1660 = vmatpush1.msra.mxu0 0.0
  %1661 = vmatprep.subr.mxu0 0.0
  %1662 = vmatpush1.msra.mxu0 0.0
  %1663 = vmatprep.subr.mxu0 0.0
  %1664 = vmatpush1.msra.mxu0 0.0
  %1665 = vmatprep.subr.mxu0 0.0
  %1666 = vmatpush1.msra.mxu0 0.0
  %1667 = vmatprep.subr.mxu0 0.0
  %1668 = vmatpush1.msra.mxu0 0.0
  %1669 = vmatprep.subr.mxu0 0.0
  %1670 = vmatpush1.msra.mxu0 0.0
  %1671 = vmatprep.subr.mxu0 0.0
  %1672 = vmatpush1.msra.mxu0 0.0
  %1673 = vmatprep.subr.mxu0 0.0
  %1674 = vmatpush1.msra.mxu0 0.0
  %1675 = vmatprep.mubr.f32.mxu0 0.0
  %1676 = vmatmul.mubr.f32.gmra.mrb[0].mxu0 %v1606
  %v1677 = vpop.f32.mrb[0].mxu0
  %v1678 = vadd.f32 %v1572, %v1677
  %v1679 = vpop.f32.mrb[0].mxu0
  %1680 = vmatprep.mubr.f32.mxu0 0.0
  %1681 = vmatmul.mubr.f32.gmra.mrb[0].mxu0 %v1609
  %v1682 = vpop.f32.mrb[0].mxu0
  %v1683 = vadd.f32 %v1572, %v1682
  %v1684 = vpop.f32.mrb[0].mxu0
  %1685 = vdwg.mxu0
  %v1686 = vmax.f32 %v1678, 0.0
  %v1687 = vmax.f32 %v1683, 0.0
  %v1688 = vld [vmem:[%s2] sm:$0xff]
  %v1689 = vld [vmem:[%s2 + $0x8] sm:$0xff]
  %v1690 = vld [vmem:[%s2 + $0x10] sm:$0xff]
  %v1691 = vld [vmem:[%s2 + $0x18] sm:$0xff]
  %v1692 = vld [vmem:[%s2 + $0x20] sm:$0xff]
  %v1693 = vld [vmem:[%s2 + $0x28] sm:$0xff]
  %v1694 = vld [vmem:[%s2 + $0x30] sm:$0xff]
  %v1695 = vld [vmem:[%s2 + $0x38] sm:$0xff]
  %v1696 = vld [vmem:[%s3 + $0x2] sm:$0x1]
  %v1697 = vlaneseq
  %v1698 = vshrl.u32 %v1697, 7
  %v1699 = vsub.s32 0, %v1698
  %v1700 = vrot.slane %v1696, %v1699
  %vm1701 = vcmask 523264
  %v1703 = vsel %vm1701, %v1686, 0
  %v1706 = vsel %vm1701, %v1687, 0
  %1708 = vmatprep.subr.mxu0 0.0
  %1709 = vmatpush1.msra.mxu0 %v1688
  %1710 = vmatprep.subr.mxu0 0.0
  %1711 = vmatpush1.msra.mxu0 %v1689
  %1712 = vmatprep.subr.mxu0 0.0
  %1713 = vmatpush1.msra.mxu0 %v1690
  %1714 = vmatprep.subr.mxu0 0.0
  %1715 = vmatpush1.msra.mxu0 %v1691
  %1716 = vmatprep.subr.mxu0 0.0
  %1717 = vmatpush1.msra.mxu0 %v1692
  %1718 = vmatprep.subr.mxu0 0.0
  %1719 = vmatpush1.msra.mxu0 %v1693
  %1720 = vmatprep.subr.mxu0 0.0
  %1721 = vmatpush1.msra.mxu0 %v1694
  %1722 = vmatprep.subr.mxu0 0.0
  %1723 = vmatpush1.msra.mxu0 %v1695
  %1724 = vmatprep.subr.mxu0 0.0
  %1725 = vmatpush1.msra.mxu0 0.0
  %1726 = vmatprep.subr.mxu0 0.0
  %1727 = vmatpush1.msra.mxu0 0.0
  %1728 = vmatprep.subr.mxu0 0.0
  %1729 = vmatpush1.msra.mxu0 0.0
  %1730 = vmatprep.subr.mxu0 0.0
  %1731 = vmatpush1.msra.mxu0 0.0
  %1732 = vmatprep.subr.mxu0 0.0
  %1733 = vmatpush1.msra.mxu0 0.0
  %1734 = vmatprep.subr.mxu0 0.0
  %1735 = vmatpush1.msra.mxu0 0.0
  %1736 = vmatprep.subr.mxu0 0.0
  %1737 = vmatpush1.msra.mxu0 0.0
  %1738 = vmatprep.subr.mxu0 0.0
  %1739 = vmatpush1.msra.mxu0 0.0
  %1740 = vmatprep.subr.mxu0 0.0
  %1741 = vmatpush1.msra.mxu0 0.0
  %1742 = vmatprep.subr.mxu0 0.0
  %1743 = vmatpush1.msra.mxu0 0.0
  %1744 = vmatprep.subr.mxu0 0.0
  %1745 = vmatpush1.msra.mxu0 0.0
  %1746 = vmatprep.subr.mxu0 0.0
  %1747 = vmatpush1.msra.mxu0 0.0
  %1748 = vmatprep.subr.mxu0 0.0
  %1749 = vmatpush1.msra.mxu0 0.0
  %1750 = vmatprep.subr.mxu0 0.0
  %1751 = vmatpush1.msra.mxu0 0.0
  %1752 = vmatprep.subr.mxu0 0.0
  %1753 = vmatpush1.msra.mxu0 0.0
  %1754 = vmatprep.subr.mxu0 0.0
  %1755 = vmatpush1.msra.mxu0 0.0
  %1756 = vmatprep.subr.mxu0 0.0
  %1757 = vmatpush1.msra.mxu0 0.0
  %1758 = vmatprep.subr.mxu0 0.0
  %1759 = vmatpush1.msra.mxu0 0.0
  %1760 = vmatprep.subr.mxu0 0.0
  %1761 = vmatpush1.msra.mxu0 0.0
  %1762 = vmatprep.subr.mxu0 0.0
  %1763 = vmatpush1.msra.mxu0 0.0
  %1764 = vmatprep.subr.mxu0 0.0
  %1765 = vmatpush1.msra.mxu0 0.0
  %1766 = vmatprep.subr.mxu0 0.0
  %1767 = vmatpush1.msra.mxu0 0.0
  %1768 = vmatprep.subr.mxu0 0.0
  %1769 = vmatpush1.msra.mxu0 0.0
  %1770 = vmatprep.subr.mxu0 0.0
  %1771 = vmatpush1.msra.mxu0 0.0
  %1772 = vmatprep.mubr.f32.mxu0 0.0
  %1773 = vmatmul.mubr.f32.gmra.mrb[0].mxu0 %v1703
  %v1774 = vpop.f32.mrb[0].mxu0
  %v1775 = vadd.f32 %v1700, %v1774
  %v1776 = vpop.f32.mrb[0].mxu0
  %1777 = vmatprep.mubr.f32.mxu0 0.0
  %1778 = vmatmul.mubr.f32.gmra.mrb[0].mxu0 %v1706
  %v1779 = vpop.f32.mrb[0].mxu0
  %v1780 = vadd.f32 %v1700, %v1779
  %v1781 = vpop.f32.mrb[0].mxu0
  %1782 = vdwg.mxu0
  %v1783 = vadd.f32 %v1520, %v1775
  %v1784 = vadd.f32 %v1521, %v1780
  %1785 = vst.msk [vmem:[%s4] sm:$0xff] %vm23, %v1783
  %1786 = vst.msk [vmem:[%s4 + $0x8] sm:$0xff] %vm23, %v1784
  // Predicated region
  $region18: #{rpe_self_attention.1} parent=0 // pred_check
    _
  $region19: #{rpe_self_attention.1} parent=0 // pred_check_branch
    %1788 = sbr.rel (0) target = $region21
  $region20: #{rpe_self_attention.1} parent=0 // pred_region
    _
  $region21: #{rpe_self_attention.1} parent=0 // pred_fallthru
    _
  // Predicated region
  $region22: #{rpe_self_attention.1} parent=0 // pred_check
    _
  $region23: #{rpe_self_attention.1} parent=0 // pred_check_branch
    %1790 = sbr.rel (0) target = $region25
  $region24: #{rpe_self_attention.1} parent=0 // pred_region
    _
  $region25: #{rpe_self_attention.1} parent=0 // pred_fallthru
    _

</llo_original>
